<compile_context>
chip_gen: v7x
topology: tpu7x:2x2x1
jax: 0.10.0
libtpu: 0.0.40
codegen_flags: <defaults>
</compile_context>

<pallas_src>
import functools

import jax
import jax.numpy as jnp
from jax.experimental import pallas as pl
from jax.experimental.pallas import tpu as pltpu


def _round_up(x, m):
    return ((x + m - 1) // m) * m


def _aggregate_kernel(node_ref, edge_ref, ngi_ref, egi_ref,
                      sum_n_ref, sum_e_ref, cnt_n_ref, cnt_e_ref,
                      *, num_nodes, num_edges, node_tile, edge_tile,
                      num_batches):
    """One grid step: masked one-hot segment-sum of one node tile and one edge
    tile into this core's resident partial-sum / count outputs."""
    c = pl.program_id(0)                       # core-split index ("parallel")
    t = pl.program_id(1)                       # tile index within the split
    g = c * pl.num_programs(1) + t             # global (unclamped) tile index
    B = num_batches

    @pl.when(t == 0)
    def _init():
        sum_n_ref[...] = jnp.zeros_like(sum_n_ref)
        sum_e_ref[...] = jnp.zeros_like(sum_e_ref)
        cnt_n_ref[...] = jnp.zeros_like(cnt_n_ref)
        cnt_e_ref[...] = jnp.zeros_like(cnt_e_ref)

    def accumulate(x_ref, gid_ref, sum_ref, cnt_ref, tile, total_rows):
        TR = x_ref.shape[0]
        row0 = g * tile
        # (B, TR) masked one-hot: rows past the end of the stream (ragged
        # tail / clamped duplicate tiles) and graph ids outside [0, B) are
        # dropped.  Dropping out-of-range ids matches jax.nn.one_hot; PyTorch
        # scatter with such an index is undefined (documented divergence).
        col = jax.lax.broadcasted_iota(jnp.int32, (B, TR), 1)
        valid = (row0 + col) < total_rows
        match = jnp.logical_and(
            jax.lax.broadcasted_iota(jnp.int32, (B, TR), 0) == gid_ref[...],
            valid)
        # Zero invalid feature rows: the padded VMEM region of a partial
        # block may hold stale/garbage bits (possibly NaN) and 0 * NaN would
        # poison the MXU accumulator.  Cheap VPU select on a mem-bound tile.
        rows = row0 + jax.lax.broadcasted_iota(jnp.int32, (TR, 1), 0)
        x = jnp.where(rows < total_rows, x_ref[...], 0)
        oh = match.astype(x.dtype)             # exact 0/1, streamed dtype
        sum_ref[...] += jnp.dot(
            oh, x, preferred_element_type=jnp.float32)[None]
        cnt_ref[...] += jnp.sum(match.astype(jnp.float32), axis=-1,
                                keepdims=True)[None]

    accumulate(node_ref, ngi_ref, sum_n_ref, cnt_n_ref, node_tile, num_nodes)
    accumulate(edge_ref, egi_ref, sum_e_ref, cnt_e_ref, edge_tile, num_edges)


def _finalize_kernel(sum_n_ref, sum_e_ref, cnt_n_ref, cnt_e_ref, glob_ref,
                     w1g_ref, w1e_ref, w1n_ref, b1_ref, w2_ref, b2_ref,
                     out_ref, *, approx_reciprocal):
    """Combine per-core partials, scatter_mean normalize, fused MLP."""
    sum_n = jnp.sum(sum_n_ref[...], axis=0)                    # (B, Dn)
    sum_e = jnp.sum(sum_e_ref[...], axis=0)                    # (B, De)
    cnt_n = jnp.maximum(jnp.sum(cnt_n_ref[...], axis=0), 1.0)  # (B, 1)
    cnt_e = jnp.maximum(jnp.sum(cnt_e_ref[...], axis=0), 1.0)
    if approx_reciprocal:
        agg_n = sum_n * pl.reciprocal(cnt_n, approx=True)      # EUP slot
        agg_e = sum_e * pl.reciprocal(cnt_e, approx=True)
    else:
        agg_n = sum_n / cnt_n
        agg_e = sum_e / cnt_e

    # concat([global, agg_edges, agg_nodes]) @ W1 == sum of per-segment
    # matmuls (W1 pre-split in the wrapper; avoids an in-kernel lane concat).
    h = (jnp.dot(glob_ref[...].astype(jnp.float32), w1g_ref[...],
                 preferred_element_type=jnp.float32)
         + jnp.dot(agg_e, w1e_ref[...], preferred_element_type=jnp.float32)
         + jnp.dot(agg_n, w1n_ref[...], preferred_element_type=jnp.float32)
         + b1_ref[...])
    h = jnp.maximum(h, 0.0)
    out_ref[...] = (jnp.dot(h, w2_ref[...], preferred_element_type=jnp.float32)
                    + b2_ref[...])


def global_block(node_attr, edge_attr, global_attr, ng_index, eg_index,
                 w1, b1, w2, b2, *,
                 row_tile=4096,                 # target rows per grid step
                 num_row_splits=2,              # >=2 exploits v7x dual-TC
                 use_approx_reciprocal=False,   # EUP reciprocal in finalize
                 vmem_limit_bytes=32 * 1024 * 1024):
    """GlobalBlock forward: no extra HBM passes are added in the wrapper —
    node/edge features and graph ids are streamed as-is (any dtype the
    producer emits, e.g. bf16), with ragged tails masked in-kernel."""
    B, Dg = global_attr.shape
    N, Dn = node_attr.shape
    E, De = edge_attr.shape
    L = w1.shape[1]
    Do = w2.shape[1]
    assert w1.shape[0] == Dg + De + Dn
    assert N > 0 and E > 0 and B > 0

    C = max(int(num_row_splits), 1)
    # Both streams finish in the same number of grid steps, with independent
    # per-stream tile sizes (no padding of the shorter stream to the longer).
    base_blocks = max(pl.cdiv(N, row_tile), pl.cdiv(E, row_tile), 1)
    T = pl.cdiv(base_blocks, C)
    num_steps = C * T

    def pick_tile(rows):
        # Multiple of 128 (lane constraint of the (1, tile) id stream), or the
        # full row count when smaller (full-extent blocks are always legal).
        return min(_round_up(pl.cdiv(rows, num_steps), 128), rows)

    node_tile = pick_tile(N)
    edge_tile = pick_tile(E)
    nb_n = pl.cdiv(N, node_tile)
    nb_e = pl.cdiv(E, edge_tile)

    # Graph ids: free (1, R) view; cast only if the producer dtype isn't i32.
    ngi = ng_index.reshape(1, N)
    egi = eg_index.reshape(1, E)
    if ngi.dtype != jnp.int32:
        ngi = ngi.astype(jnp.int32)
    if egi.dtype != jnp.int32:
        egi = egi.astype(jnp.int32)

    # Reference net input order: [global_attr, agg_edges, agg_nodes].
    w1f = w1.astype(jnp.float32)
    w1g, w1e, w1n = w1f[:Dg], w1f[Dg:Dg + De], w1f[Dg + De:]

    def stream_map(nb):
        # Clamp so steps past the end of a stream re-read its last block;
        # the in-kernel row mask zeroes their contribution.
        return lambda c, t: (jnp.minimum(c * T + t, nb - 1), 0)

    def ids_map(nb):
        return lambda c, t: (0, jnp.minimum(c * T + t, nb - 1))

    agg_kernel = functools.partial(
        _aggregate_kernel, num_nodes=N, num_edges=E,
        node_tile=node_tile, edge_tile=edge_tile, num_batches=B)

    partial_shapes = (jax.ShapeDtypeStruct((C, B, Dn), jnp.float32),
                      jax.ShapeDtypeStruct((C, B, De), jnp.float32),
                      jax.ShapeDtypeStruct((C, B, 1), jnp.float32),
                      jax.ShapeDtypeStruct((C, B, 1), jnp.float32))

    sums_n, sums_e, cnts_n, cnts_e = pl.pallas_call(
        agg_kernel,
        out_shape=partial_shapes,
        grid_spec=pltpu.PrefetchScalarGridSpec(
            num_scalar_prefetch=0,
            grid=(C, T),
            in_specs=[
                pl.BlockSpec((node_tile, Dn), stream_map(nb_n)),  # nodes
                pl.BlockSpec((edge_tile, De), stream_map(nb_e)),  # edges
                pl.BlockSpec((1, node_tile), ids_map(nb_n)),      # node gids
                pl.BlockSpec((1, edge_tile), ids_map(nb_e)),      # edge gids
            ],
            out_specs=[
                pl.BlockSpec((1, B, Dn), lambda c, t: (c, 0, 0)),
                pl.BlockSpec((1, B, De), lambda c, t: (c, 0, 0)),
                pl.BlockSpec((1, B, 1), lambda c, t: (c, 0, 0)),
                pl.BlockSpec((1, B, 1), lambda c, t: (c, 0, 0)),
            ]),
        compiler_params=pltpu.CompilerParams(
            dimension_semantics=("parallel", "arbitrary"),
            vmem_limit_bytes=vmem_limit_bytes),
    )(node_attr, edge_attr, ngi, egi)

    # Tiny finalize kernel (one step): combine + normalize + 2-layer MLP.
    def full(shape):
        return pl.BlockSpec(shape, lambda i, _r=len(shape): (0,) * _r)

    fin_kernel = functools.partial(_finalize_kernel,
                                   approx_reciprocal=use_approx_reciprocal)
    return pl.pallas_call(
        fin_kernel,
        out_shape=jax.ShapeDtypeStruct((B, Do), jnp.float32),
        grid_spec=pltpu.PrefetchScalarGridSpec(
            num_scalar_prefetch=0,
            grid=(1,),
            in_specs=[full((C, B, Dn)), full((C, B, De)),
                      full((C, B, 1)), full((C, B, 1)),
                      full((B, Dg)),
                      full((Dg, L)), full((De, L)), full((Dn, L)),
                      full((1, L)), full((L, Do)), full((1, Do))],
            out_specs=full((B, Do))),
        compiler_params=pltpu.CompilerParams(
            dimension_semantics=("arbitrary",)),
    )(sums_n, sums_e, cnts_n, cnts_e, global_attr,
      w1g, w1e, w1n, b1.reshape(1, L).astype(jnp.float32),
      w2.astype(jnp.float32), b2.reshape(1, Do).astype(jnp.float32))


def _reference(node_attr, edge_attr, global_attr, ng_index, eg_index,
               w1, b1, w2, b2, num_batches):
    """Pure-JAX reference matching the PyTorch forward (f32)."""
    def scatter_mean(x, idx, B):
        oh = jax.nn.one_hot(idx, B, dtype=jnp.float32).T          # (B, rows)
        cnt = jnp.maximum(oh.sum(axis=1, keepdims=True), 1.0)
        return jnp.dot(oh, x.astype(jnp.float32),
                       precision=jax.lax.Precision.HIGHEST) / cnt
    agg_e = scatter_mean(edge_attr, eg_index, num_batches)
    agg_n = scatter_mean(node_attr, ng_index, num_batches)
    collected = jnp.concatenate(
        [global_attr.astype(jnp.float32), agg_e, agg_n], axis=-1)
    h = jnp.maximum(
        jnp.dot(collected, w1, precision=jax.lax.Precision.HIGHEST) + b1, 0.0)
    return jnp.dot(h, w2, precision=jax.lax.Precision.HIGHEST) + b2


if __name__ == "__main__":
    key = jax.random.PRNGKey(0)
    ks = jax.random.split(key, 10)

    # Small synthetic graph batch.
    num_batches = 3
    num_nodes = 300
    num_edges = 260
    node_dim = 4
    edge_dim = 4
    global_dim = 4
    latent_dim = 32
    out_dim = 4
    in_dim = global_dim + edge_dim + node_dim   # 12

    node_attr = jax.random.normal(ks[0], (num_nodes, node_dim), jnp.float32)
    edge_attr = jax.random.normal(ks[1], (num_edges, edge_dim), jnp.float32)
    global_attr = jax.random.normal(ks[2], (num_batches, global_dim), jnp.float32)
    ng_index = jax.random.randint(ks[3], (num_nodes,), 0, num_batches, jnp.int32)
    eg_index = jax.random.randint(ks[4], (num_edges,), 0, num_batches, jnp.int32)

    # MLP parameters (shapes from get_default_net(in_dim, out_dim, latent_dim)).
    w1 = 0.1 * jax.random.normal(ks[5], (in_dim, latent_dim), jnp.float32)
    b1 = 0.1 * jax.random.normal(ks[6], (latent_dim,), jnp.float32)
    w2 = 0.1 * jax.random.normal(ks[7], (latent_dim, out_dim), jnp.float32)
    b2 = 0.1 * jax.random.normal(ks[8], (out_dim,), jnp.float32)

    ref = _reference(node_attr, edge_attr, global_attr, ng_index, eg_index,
                     w1, b1, w2, b2, num_batches)

    # Default configuration (f32 streams, 2-way core split, exact divide).
    out = global_block(node_attr, edge_attr, global_attr, ng_index, eg_index,
                       w1, b1, w2, b2)
    out = jax.block_until_ready(out)
    assert out.shape == (num_batches, out_dim)
    assert jnp.allclose(out, ref, atol=1e-4, rtol=1e-4)

    # Multi-tile path (small tiles exercise ragged-tail masking + clamped
    # duplicate tiles on both splits).
    out_mt = global_block(node_attr, edge_attr, global_attr, ng_index,
                          eg_index, w1, b1, w2, b2,
                          row_tile=128, num_row_splits=2)
    out_mt = jax.block_until_ready(out_mt)
    assert jnp.allclose(out_mt, ref, atol=1e-4, rtol=1e-4)

    # Single-split path (single-TensorCore layout).
    out_1c = global_block(node_attr, edge_attr, global_attr, ng_index,
                          eg_index, w1, b1, w2, b2,
                          row_tile=128, num_row_splits=1)
    out_1c = jax.block_until_ready(out_1c)
    assert jnp.allclose(out_1c, ref, atol=1e-4, rtol=1e-4)

    # bf16 "upstream producer" path: features already bf16 before the call
    # (no wrapper cast), approx reciprocal on the EUP; accumulation stays f32.
    out_bf16 = global_block(node_attr.astype(jnp.bfloat16),
                            edge_attr.astype(jnp.bfloat16),
                            global_attr, ng_index, eg_index,
                            w1, b1, w2, b2,
                            use_approx_reciprocal=True)
    out_bf16 = jax.block_until_ready(out_bf16)
    assert jnp.allclose(out_bf16, ref, atol=2e-2, rtol=2e-2)

    print("KERNEL_OK")
</pallas_src>

<mosaic_0001>
module attributes {stable_mosaic.version = 11 : i64} {
  func.func @_aggregate_kernel(%arg0: i32, %arg1: i32, %arg2: memref<256x4xf32, #tpu.memory_space<vmem>>, %arg3: memref<256x4xf32, #tpu.memory_space<vmem>>, %arg4: memref<1x256xi32, #tpu.memory_space<vmem>>, %arg5: memref<1x256xi32, #tpu.memory_space<vmem>>, %arg6: memref<1x3x4xf32, #tpu.memory_space<vmem>>, %arg7: memref<1x3x4xf32, #tpu.memory_space<vmem>>, %arg8: memref<1x3x1xf32, #tpu.memory_space<vmem>>, %arg9: memref<1x3x1xf32, #tpu.memory_space<vmem>>) attributes {dimension_semantics = [#tpu.dimension_semantics<parallel>, #tpu.dimension_semantics<arbitrary>], iteration_bounds = array<i64: 2, 1>, scalar_prefetch = 0 : i64, scratch_operands = 0 : i64, tpu.core_type = #tpu.core_type<tc>, window_params = [{transform_indices = @transform_0, window_bounds = array<i64: 256, 4>}, {transform_indices = @transform_1, window_bounds = array<i64: 256, 4>}, {transform_indices = @transform_2, window_bounds = array<i64: 1, 256>}, {transform_indices = @transform_3, window_bounds = array<i64: 1, 256>}, {transform_indices = @transform_4, window_bounds = array<i64: 1, 3, 4>}, {transform_indices = @transform_5, window_bounds = array<i64: 1, 3, 4>}, {transform_indices = @transform_6, window_bounds = array<i64: 1, 3, 1>}, {transform_indices = @transform_7, window_bounds = array<i64: 1, 3, 1>}]} {
    %c1_i32 = arith.constant 1 : i32
    %0 = arith.muli %arg0, %c1_i32 : i32
    %1 = arith.addi %0, %arg1 : i32
    %c0_i32 = arith.constant 0 : i32
    %2 = arith.cmpi eq, %arg1, %c0_i32 : i32
    %3 = arith.extui %2 : i1 to i32
    %c0_i32_0 = arith.constant 0 : i32
    %4 = arith.cmpi ne, %3, %c0_i32_0 : i32
    scf.if %4 {
      %cst_40 = arith.constant 0.000000e+00 : f32
      %79 = vector.broadcast %cst_40 : f32 to vector<1x3x4xf32>
      %c0_41 = arith.constant 0 : index
      %c0_42 = arith.constant 0 : index
      %c0_43 = arith.constant 0 : index
      %80 = vector.load %arg6[%c0_41, %c0_42, %c0_43] : memref<1x3x4xf32, #tpu.memory_space<vmem>>, vector<1x3x4xf32>
      tpu.vector_store %arg6[%c0_41, %c0_42, %c0_43], %79 {strides = array<i32>} : memref<1x3x4xf32, #tpu.memory_space<vmem>>, vector<1x3x4xf32>,
      %cst_44 = arith.constant 0.000000e+00 : f32
      %81 = vector.broadcast %cst_44 : f32 to vector<1x3x4xf32>
      %c0_45 = arith.constant 0 : index
      %c0_46 = arith.constant 0 : index
      %c0_47 = arith.constant 0 : index
      %82 = vector.load %arg7[%c0_45, %c0_46, %c0_47] : memref<1x3x4xf32, #tpu.memory_space<vmem>>, vector<1x3x4xf32>
      tpu.vector_store %arg7[%c0_45, %c0_46, %c0_47], %81 {strides = array<i32>} : memref<1x3x4xf32, #tpu.memory_space<vmem>>, vector<1x3x4xf32>,
      %cst_48 = arith.constant 0.000000e+00 : f32
      %83 = vector.broadcast %cst_48 : f32 to vector<1x3x1xf32>
      %c0_49 = arith.constant 0 : index
      %c0_50 = arith.constant 0 : index
      %c0_51 = arith.constant 0 : index
      %84 = vector.load %arg8[%c0_49, %c0_50, %c0_51] : memref<1x3x1xf32, #tpu.memory_space<vmem>>, vector<1x3x1xf32>
      tpu.vector_store %arg8[%c0_49, %c0_50, %c0_51], %83 {strides = array<i32>} : memref<1x3x1xf32, #tpu.memory_space<vmem>>, vector<1x3x1xf32>,
      %cst_52 = arith.constant 0.000000e+00 : f32
      %85 = vector.broadcast %cst_52 : f32 to vector<1x3x1xf32>
      %c0_53 = arith.constant 0 : index
      %c0_54 = arith.constant 0 : index
      %c0_55 = arith.constant 0 : index
      %86 = vector.load %arg9[%c0_53, %c0_54, %c0_55] : memref<1x3x1xf32, #tpu.memory_space<vmem>>, vector<1x3x1xf32>
      tpu.vector_store %arg9[%c0_53, %c0_54, %c0_55], %85 {strides = array<i32>} : memref<1x3x1xf32, #tpu.memory_space<vmem>>, vector<1x3x1xf32>,
    } else {
    }
    %c256_i32 = arith.constant 256 : i32
    %5 = arith.muli %1, %c256_i32 : i32
    %6 = tpu.iota {dimensions = array<i32: 1>} : vector<3x256xi32>
    %7 = vector.broadcast %5 : i32 to vector<3x256xi32>
    %8 = arith.addi %7, %6 : vector<3x256xi32>
    %c300_i32 = arith.constant 300 : i32
    %9 = vector.broadcast %c300_i32 : i32 to vector<3x256xi32>
    %10 = arith.cmpi slt, %8, %9 : vector<3x256xi32>
    %11 = tpu.iota {dimensions = array<i32: 0>} : vector<3x256xi32>
    %c0 = arith.constant 0 : index
    %c0_1 = arith.constant 0 : index
    %12 = vector.load %arg4[%c0, %c0_1] : memref<1x256xi32, #tpu.memory_space<vmem>>, vector<1x256xi32>
    %13 = vector.broadcast %12 : vector<1x256xi32> to vector<3x256xi32>
    %14 = arith.cmpi eq, %11, %13 : vector<3x256xi32>
    %15 = arith.andi %14, %10 : vector<3x256xi1>
    %16 = tpu.iota {dimensions = array<i32: 0>} : vector<256x1xi32>
    %17 = vector.broadcast %5 : i32 to vector<256x1xi32>
    %18 = arith.addi %17, %16 : vector<256x1xi32>
    %c300_i32_2 = arith.constant 300 : i32
    %19 = vector.broadcast %c300_i32_2 : i32 to vector<256x1xi32>
    %20 = arith.cmpi slt, %18, %19 : vector<256x1xi32>
    %c0_3 = arith.constant 0 : index
    %c0_4 = arith.constant 0 : index
    %21 = vector.load %arg2[%c0_3, %c0_4] : memref<256x4xf32, #tpu.memory_space<vmem>>, vector<256x4xf32>
    %c0_i32_5 = arith.constant 0 : i32
    %22 = arith.sitofp %c0_i32_5 : i32 to f32
    %23 = vector.shape_cast %20 : vector<256x1xi1> to vector<256x1xi1>
    %24 = vector.broadcast %23 : vector<256x1xi1> to vector<256x4xi1>
    %25 = vector.broadcast %22 : f32 to vector<256x4xf32>
    %26 = arith.select %24, %21, %25 : vector<256x4xi1>, vector<256x4xf32>
    %27 = arith.extui %15 : vector<3x256xi1> to vector<3x256xi32>
    %28 = arith.sitofp %27 : vector<3x256xi32> to vector<3x256xf32>
    %c0_6 = arith.constant 0 : index
    %c0_7 = arith.constant 0 : index
    %c0_8 = arith.constant 0 : index
    %29 = vector.load %arg6[%c0_6, %c0_7, %c0_8] : memref<1x3x4xf32, #tpu.memory_space<vmem>>, vector<1x3x4xf32>
    %cst = arith.constant dense<0.000000e+00> : vector<3x4xf32>
    %30 = tpu.matmul %28, %26, %cst {dimension_numbers = #tpu.dot_dimension_numbers<[1], [0], [0], [1], [0, 0, 1, 1], [], []>} : vector<3x256xf32>, vector<256x4xf32>, vector<3x4xf32> -> vector<3x4xf32>
    %31 = vector.shape_cast %30 : vector<3x4xf32> to vector<1x3x4xf32>
    %32 = arith.addf %29, %31 : vector<1x3x4xf32>
    %c0_9 = arith.constant 0 : index
    %c0_10 = arith.constant 0 : index
    %c0_11 = arith.constant 0 : index
    %33 = vector.load %arg6[%c0_9, %c0_10, %c0_11] : memref<1x3x4xf32, #tpu.memory_space<vmem>>, vector<1x3x4xf32>
    tpu.vector_store %arg6[%c0_9, %c0_10, %c0_11], %32 {strides = array<i32>} : memref<1x3x4xf32, #tpu.memory_space<vmem>>, vector<1x3x4xf32>,
    %c0_12 = arith.constant 0 : index
    %c0_13 = arith.constant 0 : index
    %c0_14 = arith.constant 0 : index
    %34 = vector.load %arg8[%c0_12, %c0_13, %c0_14] : memref<1x3x1xf32, #tpu.memory_space<vmem>>, vector<1x3x1xf32>
    %35 = arith.extui %15 : vector<3x256xi1> to vector<3x256xi32>
    %36 = arith.sitofp %35 : vector<3x256xi32> to vector<3x256xf32>
    %cst_15 = arith.constant dense<0.000000e+00> : vector<3xf32>
    %37 = vector.multi_reduction <add>, %36, %cst_15 [1] : vector<3x256xf32> to vector<3xf32>
    %38 = vector.shape_cast %37 : vector<3xf32> to vector<3x1xf32>
    %39 = vector.shape_cast %38 : vector<3x1xf32> to vector<1x3x1xf32>
    %40 = arith.addf %34, %39 : vector<1x3x1xf32>
    %c0_16 = arith.constant 0 : index
    %c0_17 = arith.constant 0 : index
    %c0_18 = arith.constant 0 : index
    %41 = vector.load %arg8[%c0_16, %c0_17, %c0_18] : memref<1x3x1xf32, #tpu.memory_space<vmem>>, vector<1x3x1xf32>
    tpu.vector_store %arg8[%c0_16, %c0_17, %c0_18], %40 {strides = array<i32>} : memref<1x3x1xf32, #tpu.memory_space<vmem>>, vector<1x3x1xf32>,
    %c256_i32_19 = arith.constant 256 : i32
    %42 = arith.muli %1, %c256_i32_19 : i32
    %43 = tpu.iota {dimensions = array<i32: 1>} : vector<3x256xi32>
    %44 = vector.broadcast %42 : i32 to vector<3x256xi32>
    %45 = arith.addi %44, %43 : vector<3x256xi32>
    %c260_i32 = arith.constant 260 : i32
    %46 = vector.broadcast %c260_i32 : i32 to vector<3x256xi32>
    %47 = arith.cmpi slt, %45, %46 : vector<3x256xi32>
    %48 = tpu.iota {dimensions = array<i32: 0>} : vector<3x256xi32>
    %c0_20 = arith.constant 0 : index
    %c0_21 = arith.constant 0 : index
    %49 = vector.load %arg5[%c0_20, %c0_21] : memref<1x256xi32, #tpu.memory_space<vmem>>, vector<1x256xi32>
    %50 = vector.broadcast %49 : vector<1x256xi32> to vector<3x256xi32>
    %51 = arith.cmpi eq, %48, %50 : vector<3x256xi32>
    %52 = arith.andi %51, %47 : vector<3x256xi1>
    %53 = tpu.iota {dimensions = array<i32: 0>} : vector<256x1xi32>
    %54 = vector.broadcast %42 : i32 to vector<256x1xi32>
    %55 = arith.addi %54, %53 : vector<256x1xi32>
    %c260_i32_22 = arith.constant 260 : i32
    %56 = vector.broadcast %c260_i32_22 : i32 to vector<256x1xi32>
    %57 = arith.cmpi slt, %55, %56 : vector<256x1xi32>
    %c0_23 = arith.constant 0 : index
    %c0_24 = arith.constant 0 : index
    %58 = vector.load %arg3[%c0_23, %c0_24] : memref<256x4xf32, #tpu.memory_space<vmem>>, vector<256x4xf32>
    %c0_i32_25 = arith.constant 0 : i32
    %59 = arith.sitofp %c0_i32_25 : i32 to f32
    %60 = vector.shape_cast %57 : vector<256x1xi1> to vector<256x1xi1>
    %61 = vector.broadcast %60 : vector<256x1xi1> to vector<256x4xi1>
    %62 = vector.broadcast %59 : f32 to vector<256x4xf32>
    %63 = arith.select %61, %58, %62 : vector<256x4xi1>, vector<256x4xf32>
    %64 = arith.extui %52 : vector<3x256xi1> to vector<3x256xi32>
    %65 = arith.sitofp %64 : vector<3x256xi32> to vector<3x256xf32>
    %c0_26 = arith.constant 0 : index
    %c0_27 = arith.constant 0 : index
    %c0_28 = arith.constant 0 : index
    %66 = vector.load %arg7[%c0_26, %c0_27, %c0_28] : memref<1x3x4xf32, #tpu.memory_space<vmem>>, vector<1x3x4xf32>
    %cst_29 = arith.constant dense<0.000000e+00> : vector<3x4xf32>
    %67 = tpu.matmul %65, %63, %cst_29 {dimension_numbers = #tpu.dot_dimension_numbers<[1], [0], [0], [1], [0, 0, 1, 1], [], []>} : vector<3x256xf32>, vector<256x4xf32>, vector<3x4xf32> -> vector<3x4xf32>
    %68 = vector.shape_cast %67 : vector<3x4xf32> to vector<1x3x4xf32>
    %69 = arith.addf %66, %68 : vector<1x3x4xf32>
    %c0_30 = arith.constant 0 : index
    %c0_31 = arith.constant 0 : index
    %c0_32 = arith.constant 0 : index
    %70 = vector.load %arg7[%c0_30, %c0_31, %c0_32] : memref<1x3x4xf32, #tpu.memory_space<vmem>>, vector<1x3x4xf32>
    tpu.vector_store %arg7[%c0_30, %c0_31, %c0_32], %69 {strides = array<i32>} : memref<1x3x4xf32, #tpu.memory_space<vmem>>, vector<1x3x4xf32>,
    %c0_33 = arith.constant 0 : index
    %c0_34 = arith.constant 0 : index
    %c0_35 = arith.constant 0 : index
    %71 = vector.load %arg9[%c0_33, %c0_34, %c0_35] : memref<1x3x1xf32, #tpu.memory_space<vmem>>, vector<1x3x1xf32>
    %72 = arith.extui %52 : vector<3x256xi1> to vector<3x256xi32>
    %73 = arith.sitofp %72 : vector<3x256xi32> to vector<3x256xf32>
    %cst_36 = arith.constant dense<0.000000e+00> : vector<3xf32>
    %74 = vector.multi_reduction <add>, %73, %cst_36 [1] : vector<3x256xf32> to vector<3xf32>
    %75 = vector.shape_cast %74 : vector<3xf32> to vector<3x1xf32>
    %76 = vector.shape_cast %75 : vector<3x1xf32> to vector<1x3x1xf32>
    %77 = arith.addf %71, %76 : vector<1x3x1xf32>
    %c0_37 = arith.constant 0 : index
    %c0_38 = arith.constant 0 : index
    %c0_39 = arith.constant 0 : index
    %78 = vector.load %arg9[%c0_37, %c0_38, %c0_39] : memref<1x3x1xf32, #tpu.memory_space<vmem>>, vector<1x3x1xf32>
    tpu.vector_store %arg9[%c0_37, %c0_38, %c0_39], %77 {strides = array<i32>} : memref<1x3x1xf32, #tpu.memory_space<vmem>>, vector<1x3x1xf32>,
    return
  }
  func.func @transform_0(%arg0: i32, %arg1: i32) -> (i32, i32) {
    %c1_i32 = arith.constant 1 : i32
    %0 = arith.muli %arg0, %c1_i32 : i32
    %1 = arith.addi %0, %arg1 : i32
    %c1_i32_0 = arith.constant 1 : i32
    %2 = arith.minsi %1, %c1_i32_0 : i32
    %c0_i32 = arith.constant 0 : i32
    %c0_i32_1 = arith.constant 0 : i32
    return %2, %c0_i32 : i32, i32
  }
  func.func @transform_1(%arg0: i32, %arg1: i32) -> (i32, i32) {
    %c1_i32 = arith.constant 1 : i32
    %0 = arith.muli %arg0, %c1_i32 : i32
    %1 = arith.addi %0, %arg1 : i32
    %c1_i32_0 = arith.constant 1 : i32
    %2 = arith.minsi %1, %c1_i32_0 : i32
    %c0_i32 = arith.constant 0 : i32
    %c0_i32_1 = arith.constant 0 : i32
    return %2, %c0_i32 : i32, i32
  }
  func.func @transform_2(%arg0: i32, %arg1: i32) -> (i32, i32) {
    %c1_i32 = arith.constant 1 : i32
    %0 = arith.muli %arg0, %c1_i32 : i32
    %1 = arith.addi %0, %arg1 : i32
    %c1_i32_0 = arith.constant 1 : i32
    %2 = arith.minsi %1, %c1_i32_0 : i32
    %c0_i32 = arith.constant 0 : i32
    %c0_i32_1 = arith.constant 0 : i32
    return %c0_i32, %2 : i32, i32
  }
  func.func @transform_3(%arg0: i32, %arg1: i32) -> (i32, i32) {
    %c1_i32 = arith.constant 1 : i32
    %0 = arith.muli %arg0, %c1_i32 : i32
    %1 = arith.addi %0, %arg1 : i32
    %c1_i32_0 = arith.constant 1 : i32
    %2 = arith.minsi %1, %c1_i32_0 : i32
    %c0_i32 = arith.constant 0 : i32
    %c0_i32_1 = arith.constant 0 : i32
    return %c0_i32, %2 : i32, i32
  }
  func.func @transform_4(%arg0: i32, %arg1: i32) -> (i32, i32, i32) {
    %c0_i32 = arith.constant 0 : i32
    %c0_i32_0 = arith.constant 0 : i32
    %c0_i32_1 = arith.constant 0 : i32
    return %arg0, %c0_i32, %c0_i32_0 : i32, i32, i32
  }
  func.func @transform_5(%arg0: i32, %arg1: i32) -> (i32, i32, i32) {
    %c0_i32 = arith.constant 0 : i32
    %c0_i32_0 = arith.constant 0 : i32
    %c0_i32_1 = arith.constant 0 : i32
    return %arg0, %c0_i32, %c0_i32_0 : i32, i32, i32
  }
  func.func @transform_6(%arg0: i32, %arg1: i32) -> (i32, i32, i32) {
    %c0_i32 = arith.constant 0 : i32
    %c0_i32_0 = arith.constant 0 : i32
    %c0_i32_1 = arith.constant 0 : i32
    return %arg0, %c0_i32, %c0_i32_0 : i32, i32, i32
  }
  func.func @transform_7(%arg0: i32, %arg1: i32) -> (i32, i32, i32) {
    %c0_i32 = arith.constant 0 : i32
    %c0_i32_0 = arith.constant 0 : i32
    %c0_i32_1 = arith.constant 0 : i32
    return %arg0, %c0_i32, %c0_i32_0 : i32, i32, i32
  }
}

</mosaic_0001>

<llo_original>
// kernel: tpu_custom_call.1
$region0: #{tpu_custom_call.1}
  #allocation0 [shape = 'u32[]', space=smem, size = 0x4, offset = 0x4, fixed_abs, tag = 'smem constant byte address 0x4 - core index']
  #allocation1 [shape = 'u32[144,128]{1,0:T(1,128)}', space=vmem, size = 0x12000, scoped, tag = 'internal scratch']
  %s0 = inlined_call_operand.vmem [shape: f32[300,4], index: 0, kind: input, shape index: {}]
  %s1 = inlined_call_operand.vmem [shape: f32[260,4], index: 1, kind: input, shape index: {}]
  %s2 = inlined_call_operand.vmem [shape: s32[1,300], index: 2, kind: input, shape index: {}]
  %s3 = inlined_call_operand.vmem [shape: s32[1,260], index: 3, kind: input, shape index: {}]
  %s4 = inlined_call_operand.vmem [shape: f32[2,3,4], index: 4, kind: output, shape index: {0}]
  %s5 = inlined_call_operand.vmem [shape: f32[2,3,4], index: 5, kind: output, shape index: {1}]
  %s6 = inlined_call_operand.vmem [shape: f32[2,3,1], index: 6, kind: output, shape index: {2}]
  %s7 = inlined_call_operand.vmem [shape: f32[2,3,1], index: 7, kind: output, shape index: {3}]
  %8 = xla_tuple %s4, %s5, %s6, %s7
  %s9 = sld [smem:[#allocation0]]
  $region77: #{tpu_custom_call.1} parent=0
    _
  %s11 = ssub.s32 1, %s9
  %s12 = scalar_select 0, %s11, %s9
  loop: start=0, step=1, limit=4
  $region2: #{tpu_custom_call.1} parent=0 // loop_pre_header
    _
  $region3: #{tpu_custom_call.1} parent=0 // loop_header
    %s14 = sphi 0, %s18
    %p15 = scmp.ge.s32.totalorder %s14, 4
    %s21 = sphi 0, %s33
    %s22 = sphi 0, %s29
    %s23 = sphi 0, %s21
    %s24 = sphi 0, %s22
    %s25 = sphi 0, %s23
    %s26 = sphi 0, %s24
    %s42 = sphi 0, %s44
    %s45 = sphi 0, %s42
    %s46 = sphi 0, %s45
    %s62 = sphi 0, %s46
    %s74 = sphi 0, %s76
    %s77 = sphi 0, %s74
    %s78 = sphi 0, %s77
    %s94 = sphi 0, %s78
    %s106 = sphi 0, %s108
    %s109 = sphi 0, %s106
    %s110 = sphi 0, %s109
    %s126 = sphi 0, %s110
    %s138 = sphi 0, %s140
    %s141 = sphi 0, %s138
    %s142 = sphi 0, %s141
    %s158 = sphi 0, %s142
    %s164 = sphi 0, %s166
    %s167 = sphi 0, %s164
    %s168 = sphi 0, %s167
    %s184 = sphi 0, %s168
    %s190 = sphi 0, %s192
    %s193 = sphi 0, %s190
    %s194 = sphi 0, %s193
    %s210 = sphi 0, %s194
    %s216 = sphi 0, %s218
    %s219 = sphi 0, %s216
    %s220 = sphi 0, %s219
    %s236 = sphi 0, %s220
    %s242 = sphi 0, %s244
    %s245 = sphi 0, %s242
    %s246 = sphi 0, %s245
    %s262 = sphi 0, %s246
  $region4: #{tpu_custom_call.1} parent=0 // loop_header_branch
    %17 = sbr.rel (%p15) target = $region8
  $region5: #{tpu_custom_call.1} parent=0 // loop_body
    %s19 = ssub.s32 %s14, 1
    %s20 = ssub.s32 %s14, 2
    %s27 = sadd.s32 1, %s22
    %p28 = scmp.ge.s32.totalorder %s27, 1
    %s29 = scalar_select %p28, 0, %s27
    %s30 = sadd.s32 1, %s21
    %s31 = scalar_select %p28, %s30, %s21
    %p32 = scmp.ge.s32.totalorder %s31, 2
    %s33 = scalar_select %p32, 0, %s31
    %s34 = sadd.s32 %s21, %s22
    %p35 = scmp.lt.s32.totalorder %s34, 1
    %s36 = scalar_select %p35, %s34, 1
    %s37 = sadd.s32 %s33, %s29
    %p38 = scmp.lt.s32.totalorder %s37, 1
    %s39 = scalar_select %p38, %s37, 1
    %s40 = ssub.s32 %s36, %s39
    %p41 = scmp.eq.s32.totalorder %s40, 0
    %s43 = sadd.s32 %s42, 1
    %s44 = scalar_select %p41, %s42, %s43
    %p47 = pneg %p41
    %p48 = scmp.eq.s32.totalorder %s14, 1
    %p49 = por %p47, %p48
    %p50 = scmp.ne.s32.totalorder %s42, %s45
    %p51 = scmp.eq.s32.totalorder %s14, 0
    %p52 = por %p50, %p51
    %p53 = scmp.ne.s32.totalorder %s42, %s45
    %p54 = scmp.eq.s32.totalorder %s19, 1
    %p55 = por %p53, %p54
    %p56 = scmp.ne.s32.totalorder %s45, %s46
    %p57 = scmp.eq.s32.totalorder %s19, 0
    %p58 = por %p56, %p57
    %p59 = scmp.ne.s32.totalorder %s45, %s46
    %p60 = scmp.eq.s32.totalorder %s20, 1
    %p61 = por %p59, %p60
    %p63 = scmp.ne.s32.totalorder %s46, %s62
    %p64 = scmp.eq.s32.totalorder %s20, 0
    %p65 = por %p63, %p64
    %s66 = sadd.s32 %s21, %s22
    %p67 = scmp.lt.s32.totalorder %s66, 1
    %s68 = scalar_select %p67, %s66, 1
    %s69 = sadd.s32 %s33, %s29
    %p70 = scmp.lt.s32.totalorder %s69, 1
    %s71 = scalar_select %p70, %s69, 1
    %s72 = ssub.s32 %s68, %s71
    %p73 = scmp.eq.s32.totalorder %s72, 0
    %s75 = sadd.s32 %s74, 1
    %s76 = scalar_select %p73, %s74, %s75
    %p79 = pneg %p73
    %p80 = scmp.eq.s32.totalorder %s14, 1
    %p81 = por %p79, %p80
    %p82 = scmp.ne.s32.totalorder %s74, %s77
    %p83 = scmp.eq.s32.totalorder %s14, 0
    %p84 = por %p82, %p83
    %p85 = scmp.ne.s32.totalorder %s74, %s77
    %p86 = scmp.eq.s32.totalorder %s19, 1
    %p87 = por %p85, %p86
    %p88 = scmp.ne.s32.totalorder %s77, %s78
    %p89 = scmp.eq.s32.totalorder %s19, 0
    %p90 = por %p88, %p89
    %p91 = scmp.ne.s32.totalorder %s77, %s78
    %p92 = scmp.eq.s32.totalorder %s20, 1
    %p93 = por %p91, %p92
    %p95 = scmp.ne.s32.totalorder %s78, %s94
    %p96 = scmp.eq.s32.totalorder %s20, 0
    %p97 = por %p95, %p96
    %s98 = sadd.s32 %s21, %s22
    %p99 = scmp.lt.s32.totalorder %s98, 1
    %s100 = scalar_select %p99, %s98, 1
    %s101 = sadd.s32 %s33, %s29
    %p102 = scmp.lt.s32.totalorder %s101, 1
    %s103 = scalar_select %p102, %s101, 1
    %s104 = ssub.s32 %s100, %s103
    %p105 = scmp.eq.s32.totalorder %s104, 0
    %s107 = sadd.s32 %s106, 1
    %s108 = scalar_select %p105, %s106, %s107
    %p111 = pneg %p105
    %p112 = scmp.eq.s32.totalorder %s14, 1
    %p113 = por %p111, %p112
    %p114 = scmp.ne.s32.totalorder %s106, %s109
    %p115 = scmp.eq.s32.totalorder %s14, 0
    %p116 = por %p114, %p115
    %p117 = scmp.ne.s32.totalorder %s106, %s109
    %p118 = scmp.eq.s32.totalorder %s19, 1
    %p119 = por %p117, %p118
    %p120 = scmp.ne.s32.totalorder %s109, %s110
    %p121 = scmp.eq.s32.totalorder %s19, 0
    %p122 = por %p120, %p121
    %p123 = scmp.ne.s32.totalorder %s109, %s110
    %p124 = scmp.eq.s32.totalorder %s20, 1
    %p125 = por %p123, %p124
    %p127 = scmp.ne.s32.totalorder %s110, %s126
    %p128 = scmp.eq.s32.totalorder %s20, 0
    %p129 = por %p127, %p128
    %s130 = sadd.s32 %s21, %s22
    %p131 = scmp.lt.s32.totalorder %s130, 1
    %s132 = scalar_select %p131, %s130, 1
    %s133 = sadd.s32 %s33, %s29
    %p134 = scmp.lt.s32.totalorder %s133, 1
    %s135 = scalar_select %p134, %s133, 1
    %s136 = ssub.s32 %s132, %s135
    %p137 = scmp.eq.s32.totalorder %s136, 0
    %s139 = sadd.s32 %s138, 1
    %s140 = scalar_select %p137, %s138, %s139
    %p143 = pneg %p137
    %p144 = scmp.eq.s32.totalorder %s14, 1
    %p145 = por %p143, %p144
    %p146 = scmp.ne.s32.totalorder %s138, %s141
    %p147 = scmp.eq.s32.totalorder %s14, 0
    %p148 = por %p146, %p147
    %p149 = scmp.ne.s32.totalorder %s138, %s141
    %p150 = scmp.eq.s32.totalorder %s19, 1
    %p151 = por %p149, %p150
    %p152 = scmp.ne.s32.totalorder %s141, %s142
    %p153 = scmp.eq.s32.totalorder %s19, 0
    %p154 = por %p152, %p153
    %p155 = scmp.ne.s32.totalorder %s141, %s142
    %p156 = scmp.eq.s32.totalorder %s20, 1
    %p157 = por %p155, %p156
    %p159 = scmp.ne.s32.totalorder %s142, %s158
    %p160 = scmp.eq.s32.totalorder %s20, 0
    %p161 = por %p159, %p160
    %s162 = ssub.s32 %s21, %s33
    %p163 = scmp.eq.s32.totalorder %s162, 0
    %s165 = sadd.s32 %s164, 1
    %s166 = scalar_select %p163, %s164, %s165
    %p169 = pneg %p163
    %p170 = scmp.eq.s32.totalorder %s14, 1
    %p171 = por %p169, %p170
    %p172 = scmp.ne.s32.totalorder %s164, %s167
    %p173 = scmp.eq.s32.totalorder %s14, 0
    %p174 = por %p172, %p173
    %p175 = scmp.ne.s32.totalorder %s164, %s167
    %p176 = scmp.eq.s32.totalorder %s19, 1
    %p177 = por %p175, %p176
    %p178 = scmp.ne.s32.totalorder %s167, %s168
    %p179 = scmp.eq.s32.totalorder %s19, 0
    %p180 = por %p178, %p179
    %p181 = scmp.ne.s32.totalorder %s167, %s168
    %p182 = scmp.eq.s32.totalorder %s20, 1
    %p183 = por %p181, %p182
    %p185 = scmp.ne.s32.totalorder %s168, %s184
    %p186 = scmp.eq.s32.totalorder %s20, 0
    %p187 = por %p185, %p186
    %s188 = ssub.s32 %s21, %s33
    %p189 = scmp.eq.s32.totalorder %s188, 0
    %s191 = sadd.s32 %s190, 1
    %s192 = scalar_select %p189, %s190, %s191
    %p195 = pneg %p189
    %p196 = scmp.eq.s32.totalorder %s14, 1
    %p197 = por %p195, %p196
    %p198 = scmp.ne.s32.totalorder %s190, %s193
    %p199 = scmp.eq.s32.totalorder %s14, 0
    %p200 = por %p198, %p199
    %p201 = scmp.ne.s32.totalorder %s190, %s193
    %p202 = scmp.eq.s32.totalorder %s19, 1
    %p203 = por %p201, %p202
    %p204 = scmp.ne.s32.totalorder %s193, %s194
    %p205 = scmp.eq.s32.totalorder %s19, 0
    %p206 = por %p204, %p205
    %p207 = scmp.ne.s32.totalorder %s193, %s194
    %p208 = scmp.eq.s32.totalorder %s20, 1
    %p209 = por %p207, %p208
    %p211 = scmp.ne.s32.totalorder %s194, %s210
    %p212 = scmp.eq.s32.totalorder %s20, 0
    %p213 = por %p211, %p212
    %s214 = ssub.s32 %s21, %s33
    %p215 = scmp.eq.s32.totalorder %s214, 0
    %s217 = sadd.s32 %s216, 1
    %s218 = scalar_select %p215, %s216, %s217
    %p221 = pneg %p215
    %p222 = scmp.eq.s32.totalorder %s14, 1
    %p223 = por %p221, %p222
    %p224 = scmp.ne.s32.totalorder %s216, %s219
    %p225 = scmp.eq.s32.totalorder %s14, 0
    %p226 = por %p224, %p225
    %p227 = scmp.ne.s32.totalorder %s216, %s219
    %p228 = scmp.eq.s32.totalorder %s19, 1
    %p229 = por %p227, %p228
    %p230 = scmp.ne.s32.totalorder %s219, %s220
    %p231 = scmp.eq.s32.totalorder %s19, 0
    %p232 = por %p230, %p231
    %p233 = scmp.ne.s32.totalorder %s219, %s220
    %p234 = scmp.eq.s32.totalorder %s20, 1
    %p235 = por %p233, %p234
    %p237 = scmp.ne.s32.totalorder %s220, %s236
    %p238 = scmp.eq.s32.totalorder %s20, 0
    %p239 = por %p237, %p238
    %s240 = ssub.s32 %s21, %s33
    %p241 = scmp.eq.s32.totalorder %s240, 0
    %s243 = sadd.s32 %s242, 1
    %s244 = scalar_select %p241, %s242, %s243
    %p247 = pneg %p241
    %p248 = scmp.eq.s32.totalorder %s14, 1
    %p249 = por %p247, %p248
    %p250 = scmp.ne.s32.totalorder %s242, %s245
    %p251 = scmp.eq.s32.totalorder %s14, 0
    %p252 = por %p250, %p251
    %p253 = scmp.ne.s32.totalorder %s242, %s245
    %p254 = scmp.eq.s32.totalorder %s19, 1
    %p255 = por %p253, %p254
    %p256 = scmp.ne.s32.totalorder %s245, %s246
    %p257 = scmp.eq.s32.totalorder %s19, 0
    %p258 = por %p256, %p257
    %p259 = scmp.ne.s32.totalorder %s245, %s246
    %p260 = scmp.eq.s32.totalorder %s20, 1
    %p261 = por %p259, %p260
    %p263 = scmp.ne.s32.totalorder %s246, %s262
    %p264 = scmp.eq.s32.totalorder %s20, 0
    %p265 = por %p263, %p264
    %p266 = scmp.le.s32.totalorder 1, %s14
    %p267 = scmp.lt.s32.totalorder %s14, 3
    %p268 = pnand %p266, %p267
    %p269 = pneg %p268
    // Predicated region
    $region9: #{tpu_custom_call.1} parent=5 // pred_check
      _
    $region10: #{tpu_custom_call.1} parent=5 // pred_check_branch
      %271 = sbr.rel (%p268) target = $region12
    $region11: #{tpu_custom_call.1} parent=5 // pred_region
      %s272 = ssub.s32 %s14, 1
    $region12: #{tpu_custom_call.1} parent=5 // pred_fallthru
      _
    %p273 = scmp.lt.s32.totalorder %s14, 2
    // Predicated region
    $region13: #{tpu_custom_call.1} parent=5 // pred_check
      %p274 = pneg %p273
    $region14: #{tpu_custom_call.1} parent=5 // pred_check_branch
      %276 = sbr.rel (%p274) target = $region16
    $region15: #{tpu_custom_call.1} parent=5 // pred_region
      // Predicated region
      $region17: #{tpu_custom_call.1} parent=15 // pred_check
        %p277 = pneg %p52
      $region18: #{tpu_custom_call.1} parent=15 // pred_check_branch
        %279 = sbr.rel (%p277) target = $region20
      $region19: #{tpu_custom_call.1} parent=15 // pred_region
        %s280 = sadd.s32 %s21, %s22
        %p281 = scmp.lt.s32.totalorder %s280, 1
        %s282 = scalar_select %p281, %s280, 1
        %s283 = smul.u32 32, %s282
        %s284 = ssub.s32 38, %s283
        %p285 = scmp.lt.s32.totalorder %s284, 32
        %s286 = scalar_select %p285, %s284, 32
        %s287 = smul.u32 128, %s286
        %p288 = scmp.lt.s32.totalorder %s283, 37
        %s289 = scalar_select %p288, %s283, 37
        %s290 = smul.addr %s289, 8
        %s291 = scalar_lea.vmem %s0, %s290
        %s292 = sadd.s32 %s21, %s22
        %p293 = scmp.lt.s32.totalorder %s292, 1
        %s294 = scalar_select %p293, %s292, 1
        %s295 = smul.u32 32, %s294
        %s296 = ssub.s32 38, %s295
        %p297 = scmp.lt.s32.totalorder %s296, 32
        %s298 = scalar_select %p297, %s296, 32
        %s299 = smul.u32 128, %s298
      $region20: #{tpu_custom_call.1} parent=15 // pred_fallthru
        _
      // Predicated region
      $region21: #{tpu_custom_call.1} parent=15 // pred_check
        %p300 = pneg %p84
      $region22: #{tpu_custom_call.1} parent=15 // pred_check_branch
        %302 = sbr.rel (%p300) target = $region24
      $region23: #{tpu_custom_call.1} parent=15 // pred_region
        %s303 = sadd.s32 %s21, %s22
        %p304 = scmp.lt.s32.totalorder %s303, 1
        %s305 = scalar_select %p304, %s303, 1
        %s306 = smul.u32 32, %s305
        %s307 = ssub.s32 33, %s306
        %p308 = scmp.lt.s32.totalorder %s307, 32
        %s309 = scalar_select %p308, %s307, 32
        %s310 = smul.u32 128, %s309
        %p311 = scmp.lt.s32.totalorder %s306, 32
        %s312 = scalar_select %p311, %s306, 32
        %s313 = smul.addr %s312, 8
        %s314 = scalar_lea.vmem %s1, %s313
        %s315 = sadd.s32 %s21, %s22
        %p316 = scmp.lt.s32.totalorder %s315, 1
        %s317 = scalar_select %p316, %s315, 1
        %s318 = smul.u32 32, %s317
        %s319 = ssub.s32 33, %s318
        %p320 = scmp.lt.s32.totalorder %s319, 32
        %s321 = scalar_select %p320, %s319, 32
        %s322 = smul.u32 128, %s321
      $region24: #{tpu_custom_call.1} parent=15 // pred_fallthru
        _
      // Predicated region
      $region25: #{tpu_custom_call.1} parent=15 // pred_check
        %p323 = pneg %p116
      $region26: #{tpu_custom_call.1} parent=15 // pred_check_branch
        %325 = sbr.rel (%p323) target = $region28
      $region27: #{tpu_custom_call.1} parent=15 // pred_region
        %s326 = sadd.s32 %s21, %s22
        %p327 = scmp.lt.s32.totalorder %s326, 1
        %s328 = scalar_select %p327, %s326, 1
        %s329 = smul.u32 2, %s328
        %s330 = ssub.s32 3, %s329
        %p331 = scmp.lt.s32.totalorder %s330, 2
        %s332 = scalar_select %p331, %s330, 2
        %s333 = smul.u32 16, %s332
        %p334 = scmp.lt.s32.totalorder %s329, 2
        %s335 = scalar_select %p334, %s329, 2
        %s336 = scalar_lea.vmem %s2, %s335
        %s337 = sadd.s32 %s21, %s22
        %p338 = scmp.lt.s32.totalorder %s337, 1
        %s339 = scalar_select %p338, %s337, 1
        %s340 = smul.u32 2, %s339
        %s341 = ssub.s32 3, %s340
        %p342 = scmp.lt.s32.totalorder %s341, 2
        %s343 = scalar_select %p342, %s341, 2
        %s344 = smul.u32 16, %s343
      $region28: #{tpu_custom_call.1} parent=15 // pred_fallthru
        _
      // Predicated region
      $region29: #{tpu_custom_call.1} parent=15 // pred_check
        %p345 = pneg %p148
      $region30: #{tpu_custom_call.1} parent=15 // pred_check_branch
        %347 = sbr.rel (%p345) target = $region32
      $region31: #{tpu_custom_call.1} parent=15 // pred_region
        %s348 = sadd.s32 %s21, %s22
        %p349 = scmp.lt.s32.totalorder %s348, 1
        %s350 = scalar_select %p349, %s348, 1
        %s351 = smul.u32 2, %s350
        %s352 = ssub.s32 3, %s351
        %p353 = scmp.lt.s32.totalorder %s352, 2
        %s354 = scalar_select %p353, %s352, 2
        %s355 = smul.u32 16, %s354
        %p356 = scmp.lt.s32.totalorder %s351, 2
        %s357 = scalar_select %p356, %s351, 2
        %s358 = scalar_lea.vmem %s3, %s357
        %s359 = sadd.s32 %s21, %s22
        %p360 = scmp.lt.s32.totalorder %s359, 1
        %s361 = scalar_select %p360, %s359, 1
        %s362 = smul.u32 2, %s361
        %s363 = ssub.s32 3, %s362
        %p364 = scmp.lt.s32.totalorder %s363, 2
        %s365 = scalar_select %p364, %s363, 2
        %s366 = smul.u32 16, %s365
      $region32: #{tpu_custom_call.1} parent=15 // pred_fallthru
        _
    $region16: #{tpu_custom_call.1} parent=5 // pred_fallthru
      _
    %p367 = scmp.le.s32.totalorder 1, %s14
    %p368 = scmp.lt.s32.totalorder %s14, 3
    %p369 = pnand %p367, %p368
    %p370 = pneg %p369
    // Predicated region
    $region33: #{tpu_custom_call.1} parent=5 // pred_check
      _
    $region34: #{tpu_custom_call.1} parent=5 // pred_check_branch
      %372 = sbr.rel (%p369) target = $region36
    $region35: #{tpu_custom_call.1} parent=5 // pred_region
      %s373 = ssub.s32 %s14, 1
      %s374 = sadd.s32 %s23, %s24
      %p375 = scmp.lt.s32.totalorder %s374, 1
      %s376 = scalar_select %p375, %s374, 1
      %s377 = smul.u32 32, %s376
      %s378 = ssub.s32 38, %s377
      %p379 = scmp.lt.s32.totalorder %s378, 32
      %s380 = scalar_select %p379, %s378, 32
      %s381 = smul.u32 128, %s380
      %p382 = scmp.lt.s32.totalorder %s377, 37
      %s383 = scalar_select %p382, %s377, 37
      %s384 = smul.addr %s383, 8
      %s385 = scalar_lea.vmem %s0, %s384
      %p386 = pneg %p58
      %p387 = pneg %p55
      %s388 = sadd.s32 %s23, %s24
      %p389 = scmp.lt.s32.totalorder %s388, 1
      %s390 = scalar_select %p389, %s388, 1
      %s391 = smul.u32 32, %s390
      %s392 = ssub.s32 33, %s391
      %p393 = scmp.lt.s32.totalorder %s392, 32
      %s394 = scalar_select %p393, %s392, 32
      %s395 = smul.u32 128, %s394
      %p396 = scmp.lt.s32.totalorder %s391, 32
      %s397 = scalar_select %p396, %s391, 32
      %s398 = smul.addr %s397, 8
      %s399 = scalar_lea.vmem %s1, %s398
      %p400 = pneg %p90
      %p401 = pneg %p87
      %s402 = sadd.s32 %s23, %s24
      %p403 = scmp.lt.s32.totalorder %s402, 1
      %s404 = scalar_select %p403, %s402, 1
      %s405 = smul.u32 2, %s404
      %s406 = ssub.s32 3, %s405
      %p407 = scmp.lt.s32.totalorder %s406, 2
      %s408 = scalar_select %p407, %s406, 2
      %s409 = smul.u32 16, %s408
      %p410 = scmp.lt.s32.totalorder %s405, 2
      %s411 = scalar_select %p410, %s405, 2
      %s412 = scalar_lea.vmem %s2, %s411
      %p413 = pneg %p122
      %p414 = pneg %p119
      %s415 = sadd.s32 %s23, %s24
      %p416 = scmp.lt.s32.totalorder %s415, 1
      %s417 = scalar_select %p416, %s415, 1
      %s418 = smul.u32 2, %s417
      %s419 = ssub.s32 3, %s418
      %p420 = scmp.lt.s32.totalorder %s419, 2
      %s421 = scalar_select %p420, %s419, 2
      %s422 = smul.u32 16, %s421
      %p423 = scmp.lt.s32.totalorder %s418, 2
      %s424 = scalar_select %p423, %s418, 2
      %s425 = scalar_lea.vmem %s3, %s424
      %p426 = pneg %p154
      %p427 = pneg %p151
      %p428 = pneg %p180
      %p429 = pneg %p177
      %p430 = scmp.lt.s32.totalorder %s23, 1
      %s431 = scalar_select %p430, %s23, 1
      %s432 = smul.addr %s431, 4
      %s433 = scalar_lea.vmem %s4, %s432
      %p434 = pneg %p206
      %p435 = pneg %p203
      %p436 = scmp.lt.s32.totalorder %s23, 1
      %s437 = scalar_select %p436, %s23, 1
      %s438 = smul.addr %s437, 4
      %s439 = scalar_lea.vmem %s5, %s438
      %p440 = pneg %p232
      %p441 = pneg %p229
      %p442 = scmp.lt.s32.totalorder %s23, 1
      %s443 = scalar_select %p442, %s23, 1
      %s444 = smul.addr %s443, 4
      %s445 = scalar_lea.vmem %s6, %s444
      %p446 = pneg %p258
      %p447 = pneg %p255
      %p448 = scmp.lt.s32.totalorder %s23, 1
      %s449 = scalar_select %p448, %s23, 1
      %s450 = smul.addr %s449, 4
      %s451 = scalar_lea.vmem %s7, %s450
      %s452 = sadd.s32 %s23, %s24
      %p453 = scmp.lt.s32.totalorder %s452, 1
      %s454 = scalar_select %p453, %s452, 1
      %s455 = smul.u32 32, %s454
      %s456 = ssub.s32 38, %s455
      %p457 = scmp.lt.s32.totalorder %s456, 32
      %s458 = scalar_select %p457, %s456, 32
      %s459 = smul.u32 128, %s458
      %p460 = scmp.lt.s32.totalorder %s455, 37
      %s461 = scalar_select %p460, %s455, 37
      %s462 = smul.addr %s461, 8
      %s463 = scalar_lea.vmem %s0, %s462
      %s464 = sadd.s32 %s23, %s24
      %p465 = scmp.lt.s32.totalorder %s464, 1
      %s466 = scalar_select %p465, %s464, 1
      %s467 = smul.u32 32, %s466
      %s468 = ssub.s32 38, %s467
      %p469 = scmp.lt.s32.totalorder %s468, 32
      %s470 = scalar_select %p469, %s468, 32
      %s471 = smul.u32 128, %s470
      %s472 = sadd.s32 %s23, %s24
      %p473 = scmp.lt.s32.totalorder %s472, 1
      %s474 = scalar_select %p473, %s472, 1
      %s475 = smul.u32 32, %s474
      %s476 = ssub.s32 33, %s475
      %p477 = scmp.lt.s32.totalorder %s476, 32
      %s478 = scalar_select %p477, %s476, 32
      %s479 = smul.u32 128, %s478
      %p480 = scmp.lt.s32.totalorder %s475, 32
      %s481 = scalar_select %p480, %s475, 32
      %s482 = smul.addr %s481, 8
      %s483 = scalar_lea.vmem %s1, %s482
      %s484 = sadd.s32 %s23, %s24
      %p485 = scmp.lt.s32.totalorder %s484, 1
      %s486 = scalar_select %p485, %s484, 1
      %s487 = smul.u32 32, %s486
      %s488 = ssub.s32 33, %s487
      %p489 = scmp.lt.s32.totalorder %s488, 32
      %s490 = scalar_select %p489, %s488, 32
      %s491 = smul.u32 128, %s490
      %s492 = sadd.s32 %s23, %s24
      %p493 = scmp.lt.s32.totalorder %s492, 1
      %s494 = scalar_select %p493, %s492, 1
      %s495 = smul.u32 2, %s494
      %s496 = ssub.s32 3, %s495
      %p497 = scmp.lt.s32.totalorder %s496, 2
      %s498 = scalar_select %p497, %s496, 2
      %s499 = smul.u32 16, %s498
      %p500 = scmp.lt.s32.totalorder %s495, 2
      %s501 = scalar_select %p500, %s495, 2
      %s502 = scalar_lea.vmem %s2, %s501
      %s503 = sadd.s32 %s23, %s24
      %p504 = scmp.lt.s32.totalorder %s503, 1
      %s505 = scalar_select %p504, %s503, 1
      %s506 = smul.u32 2, %s505
      %s507 = ssub.s32 3, %s506
      %p508 = scmp.lt.s32.totalorder %s507, 2
      %s509 = scalar_select %p508, %s507, 2
      %s510 = smul.u32 16, %s509
      %s511 = sadd.s32 %s23, %s24
      %p512 = scmp.lt.s32.totalorder %s511, 1
      %s513 = scalar_select %p512, %s511, 1
      %s514 = smul.u32 2, %s513
      %s515 = ssub.s32 3, %s514
      %p516 = scmp.lt.s32.totalorder %s515, 2
      %s517 = scalar_select %p516, %s515, 2
      %s518 = smul.u32 16, %s517
      %p519 = scmp.lt.s32.totalorder %s514, 2
      %s520 = scalar_select %p519, %s514, 2
      %s521 = scalar_lea.vmem %s3, %s520
      %s522 = sadd.s32 %s23, %s24
      %p523 = scmp.lt.s32.totalorder %s522, 1
      %s524 = scalar_select %p523, %s522, 1
      %s525 = smul.u32 2, %s524
      %s526 = ssub.s32 3, %s525
      %p527 = scmp.lt.s32.totalorder %s526, 2
      %s528 = scalar_select %p527, %s526, 2
      %s529 = smul.u32 16, %s528
      %p530 = scmp.lt.s32.totalorder %s23, 1
      %s531 = scalar_select %p530, %s23, 1
      %s532 = smul.addr %s531, 4
      %s533 = scalar_lea.vmem %s4, %s532
      %p534 = scmp.lt.s32.totalorder %s23, 1
      %s535 = scalar_select %p534, %s23, 1
      %s536 = smul.addr %s535, 4
      %s537 = scalar_lea.vmem %s5, %s536
      %p538 = scmp.lt.s32.totalorder %s23, 1
      %s539 = scalar_select %p538, %s23, 1
      %s540 = smul.addr %s539, 4
      %s541 = scalar_lea.vmem %s6, %s540
      %p542 = scmp.lt.s32.totalorder %s23, 1
      %s543 = scalar_select %p542, %s23, 1
      %s544 = smul.addr %s543, 4
      %s545 = scalar_lea.vmem %s7, %s544
      %s546 = sadd.s32 %s23, %s24
      %p547 = scmp.eq.s32.totalorder %s24, 0
      // Predicated region
      $region37: #{tpu_custom_call.1} parent=35 // pred_check
        %p548 = pneg %p547
      $region38: #{tpu_custom_call.1} parent=35 // pred_check_branch
        %550 = sbr.rel (%p548) target = $region40
      $region39: #{tpu_custom_call.1} parent=35 // pred_region
        %vm551 = vcmask 26624
        %552 = vst.msk [vmem:[%s533] sm:$0x7] %vm551, 0.0
        %553 = vst.msk [vmem:[%s537] sm:$0x7] %vm551, 0.0
        %vm554 = vcmask 2048
        %555 = vst.msk [vmem:[%s541] sm:$0x7] %vm554, 0.0
        %556 = vst.msk [vmem:[%s545] sm:$0x7] %vm554, 0.0
      $region40: #{tpu_custom_call.1} parent=35 // pred_fallthru
        _
      %s557 = smul.u32 %s546, 256
      %v558 = vlaneseq
      %v559 = vand.u32 %v558, 127
      %v560 = vadd.s32 %v559, 128
      %v561 = vstv %s557
      %v562 = vadd.s32 %v561, %v559
      %v563 = vadd.s32 %v561, %v560
      %vm564 = vcmp.lt.s32.totalorder %v562, 300
      %vm565 = vcmp.lt.s32.totalorder %v563, 300
      %v566 = vlaneseq
      %v567 = vshrl.u32 %v566, 7
      %v568 = vld [vmem:[%s502] sm:$0x3]
      %v569 = vlaneseq
      %v570 = vshrl.u32 %v569, 7
      %v571 = vsub.s32 0, %v570
      %v572 = vrot.slane %v568, %v571
      %v573 = vlaneseq
      %v574 = vshrl.u32 %v573, 7
      %v575 = vsub.s32 1, %v574
      %v576 = vrot.slane %v568, %v575
      %vm577 = vcmp.eq.s32.totalorder %v567, %v572
      %vm578 = vcmp.eq.s32.totalorder %v567, %v576
      %vm579 = vmand %vm577, %vm564
      %vm580 = vmand %vm578, %vm565
      %v581 = vadd.s32 %v567, 8
      %v582 = vadd.s32 %v567, 16
      %v583 = vadd.s32 %v567, 24
      %v584 = vadd.s32 %v567, 32
      %v585 = vadd.s32 %v567, 40
      %v586 = vadd.s32 %v567, 48
      %v587 = vadd.s32 %v567, 56
      %v588 = vadd.s32 %v567, 64
      %v589 = vadd.s32 %v567, 72
      %v590 = vadd.s32 %v567, 80
      %v591 = vadd.s32 %v567, 88
      %v592 = vadd.s32 %v567, 96
      %v593 = vadd.s32 %v567, 104
      %v594 = vadd.s32 %v567, 112
      %v595 = vadd.s32 %v567, 120
      %v596 = vadd.s32 %v567, 128
      %v597 = vadd.s32 %v567, 136
      %v598 = vadd.s32 %v567, 144
      %v599 = vadd.s32 %v567, 152
      %v600 = vadd.s32 %v567, 160
      %v601 = vadd.s32 %v567, 168
      %v602 = vadd.s32 %v567, 176
      %v603 = vadd.s32 %v567, 184
      %v604 = vadd.s32 %v567, 192
      %v605 = vadd.s32 %v567, 200
      %v606 = vadd.s32 %v567, 208
      %v607 = vadd.s32 %v567, 216
      %v608 = vadd.s32 %v567, 224
      %v609 = vadd.s32 %v567, 232
      %v610 = vadd.s32 %v567, 240
      %v611 = vadd.s32 %v567, 248
      %v612 = vadd.s32 %v561, %v567
      %v613 = vadd.s32 %v561, %v581
      %v614 = vadd.s32 %v561, %v582
      %v615 = vadd.s32 %v561, %v583
      %v616 = vadd.s32 %v561, %v584
      %v617 = vadd.s32 %v561, %v585
      %v618 = vadd.s32 %v561, %v586
      %v619 = vadd.s32 %v561, %v587
      %v620 = vadd.s32 %v561, %v588
      %v621 = vadd.s32 %v561, %v589
      %v622 = vadd.s32 %v561, %v590
      %v623 = vadd.s32 %v561, %v591
      %v624 = vadd.s32 %v561, %v592
      %v625 = vadd.s32 %v561, %v593
      %v626 = vadd.s32 %v561, %v594
      %v627 = vadd.s32 %v561, %v595
      %v628 = vadd.s32 %v561, %v596
      %v629 = vadd.s32 %v561, %v597
      %v630 = vadd.s32 %v561, %v598
      %v631 = vadd.s32 %v561, %v599
      %v632 = vadd.s32 %v561, %v600
      %v633 = vadd.s32 %v561, %v601
      %v634 = vadd.s32 %v561, %v602
      %v635 = vadd.s32 %v561, %v603
      %v636 = vadd.s32 %v561, %v604
      %v637 = vadd.s32 %v561, %v605
      %v638 = vadd.s32 %v561, %v606
      %v639 = vadd.s32 %v561, %v607
      %v640 = vadd.s32 %v561, %v608
      %v641 = vadd.s32 %v561, %v609
      %v642 = vadd.s32 %v561, %v610
      %v643 = vadd.s32 %v561, %v611
      %vm644 = vcmp.lt.s32.totalorder %v612, 300
      %vm645 = vcmp.lt.s32.totalorder %v613, 300
      %vm646 = vcmp.lt.s32.totalorder %v614, 300
      %vm647 = vcmp.lt.s32.totalorder %v615, 300
      %vm648 = vcmp.lt.s32.totalorder %v616, 300
      %vm649 = vcmp.lt.s32.totalorder %v617, 300
      %vm650 = vcmp.lt.s32.totalorder %v618, 300
      %vm651 = vcmp.lt.s32.totalorder %v619, 300
      %vm652 = vcmp.lt.s32.totalorder %v620, 300
      %vm653 = vcmp.lt.s32.totalorder %v621, 300
      %vm654 = vcmp.lt.s32.totalorder %v622, 300
      %vm655 = vcmp.lt.s32.totalorder %v623, 300
      %vm656 = vcmp.lt.s32.totalorder %v624, 300
      %vm657 = vcmp.lt.s32.totalorder %v625, 300
      %vm658 = vcmp.lt.s32.totalorder %v626, 300
      %vm659 = vcmp.lt.s32.totalorder %v627, 300
      %vm660 = vcmp.lt.s32.totalorder %v628, 300
      %vm661 = vcmp.lt.s32.totalorder %v629, 300
      %vm662 = vcmp.lt.s32.totalorder %v630, 300
      %vm663 = vcmp.lt.s32.totalorder %v631, 300
      %vm664 = vcmp.lt.s32.totalorder %v632, 300
      %vm665 = vcmp.lt.s32.totalorder %v633, 300
      %vm666 = vcmp.lt.s32.totalorder %v634, 300
      %vm667 = vcmp.lt.s32.totalorder %v635, 300
      %vm668 = vcmp.lt.s32.totalorder %v636, 300
      %vm669 = vcmp.lt.s32.totalorder %v637, 300
      %vm670 = vcmp.lt.s32.totalorder %v638, 300
      %vm671 = vcmp.lt.s32.totalorder %v639, 300
      %vm672 = vcmp.lt.s32.totalorder %v640, 300
      %vm673 = vcmp.lt.s32.totalorder %v641, 300
      %vm674 = vcmp.lt.s32.totalorder %v642, 300
      %vm675 = vcmp.lt.s32.totalorder %v643, 300
      %v676 = vld [vmem:[%s463] sm:$0xff]
      %v677 = vld [vmem:[%s463 + $0x8] sm:$0xff]
      %v678 = vld [vmem:[%s463 + $0x10] sm:$0xff]
      %v679 = vld [vmem:[%s463 + $0x18] sm:$0xff]
      %v680 = vld [vmem:[%s463 + $0x20] sm:$0xff]
      %v681 = vld [vmem:[%s463 + $0x28] sm:$0xff]
      %v682 = vld [vmem:[%s463 + $0x30] sm:$0xff]
      %v683 = vld [vmem:[%s463 + $0x38] sm:$0xff]
      %v684 = vld [vmem:[%s463 + $0x40] sm:$0xff]
      %v685 = vld [vmem:[%s463 + $0x48] sm:$0xff]
      %v686 = vld [vmem:[%s463 + $0x50] sm:$0xff]
      %v687 = vld [vmem:[%s463 + $0x58] sm:$0xff]
      %v688 = vld [vmem:[%s463 + $0x60] sm:$0xff]
      %v689 = vld [vmem:[%s463 + $0x68] sm:$0xff]
      %v690 = vld [vmem:[%s463 + $0x70] sm:$0xff]
      %v691 = vld [vmem:[%s463 + $0x78] sm:$0xff]
      %v692 = vld [vmem:[%s463 + $0x80] sm:$0xff]
      %v693 = vld [vmem:[%s463 + $0x88] sm:$0xff]
      %v694 = vld [vmem:[%s463 + $0x90] sm:$0xff]
      %v695 = vld [vmem:[%s463 + $0x98] sm:$0xff]
      %v696 = vld [vmem:[%s463 + $0xa0] sm:$0xff]
      %v697 = vld [vmem:[%s463 + $0xa8] sm:$0xff]
      %v698 = vld [vmem:[%s463 + $0xb0] sm:$0xff]
      %v699 = vld [vmem:[%s463 + $0xb8] sm:$0xff]
      %v700 = vld [vmem:[%s463 + $0xc0] sm:$0xff]
      %v701 = vld [vmem:[%s463 + $0xc8] sm:$0xff]
      %v702 = vld [vmem:[%s463 + $0xd0] sm:$0xff]
      %v703 = vld [vmem:[%s463 + $0xd8] sm:$0xff]
      %v704 = vld [vmem:[%s463 + $0xe0] sm:$0xff]
      %v705 = vld [vmem:[%s463 + $0xe8] sm:$0xff]
      %v706 = vld [vmem:[%s463 + $0xf0] sm:$0xff]
      %v707 = vld [vmem:[%s463 + $0xf8] sm:$0xff]
      %v708 = vsel %vm644, 1, 0
      %v709 = vsel %vm645, 1, 0
      %v710 = vsel %vm646, 1, 0
      %v711 = vsel %vm647, 1, 0
      %v712 = vsel %vm648, 1, 0
      %v713 = vsel %vm649, 1, 0
      %v714 = vsel %vm650, 1, 0
      %v715 = vsel %vm651, 1, 0
      %v716 = vsel %vm652, 1, 0
      %v717 = vsel %vm653, 1, 0
      %v718 = vsel %vm654, 1, 0
      %v719 = vsel %vm655, 1, 0
      %v720 = vsel %vm656, 1, 0
      %v721 = vsel %vm657, 1, 0
      %v722 = vsel %vm658, 1, 0
      %v723 = vsel %vm659, 1, 0
      %v724 = vsel %vm660, 1, 0
      %v725 = vsel %vm661, 1, 0
      %v726 = vsel %vm662, 1, 0
      %v727 = vsel %vm663, 1, 0
      %v728 = vsel %vm664, 1, 0
      %v729 = vsel %vm665, 1, 0
      %v730 = vsel %vm666, 1, 0
      %v731 = vsel %vm667, 1, 0
      %v732 = vsel %vm668, 1, 0
      %v733 = vsel %vm669, 1, 0
      %v734 = vsel %vm670, 1, 0
      %v735 = vsel %vm671, 1, 0
      %v736 = vsel %vm672, 1, 0
      %v737 = vsel %vm673, 1, 0
      %v738 = vsel %vm674, 1, 0
      %v739 = vsel %vm675, 1, 0
      %vm740 = vcmp.eq.s32.totalorder %v708, 1
      %vm741 = vcmp.eq.s32.totalorder %v709, 1
      %vm742 = vcmp.eq.s32.totalorder %v710, 1
      %vm743 = vcmp.eq.s32.totalorder %v711, 1
      %vm744 = vcmp.eq.s32.totalorder %v712, 1
      %vm745 = vcmp.eq.s32.totalorder %v713, 1
      %vm746 = vcmp.eq.s32.totalorder %v714, 1
      %vm747 = vcmp.eq.s32.totalorder %v715, 1
      %vm748 = vcmp.eq.s32.totalorder %v716, 1
      %vm749 = vcmp.eq.s32.totalorder %v717, 1
      %vm750 = vcmp.eq.s32.totalorder %v718, 1
      %vm751 = vcmp.eq.s32.totalorder %v719, 1
      %vm752 = vcmp.eq.s32.totalorder %v720, 1
      %vm753 = vcmp.eq.s32.totalorder %v721, 1
      %vm754 = vcmp.eq.s32.totalorder %v722, 1
      %vm755 = vcmp.eq.s32.totalorder %v723, 1
      %vm756 = vcmp.eq.s32.totalorder %v724, 1
      %vm757 = vcmp.eq.s32.totalorder %v725, 1
      %vm758 = vcmp.eq.s32.totalorder %v726, 1
      %vm759 = vcmp.eq.s32.totalorder %v727, 1
      %vm760 = vcmp.eq.s32.totalorder %v728, 1
      %vm761 = vcmp.eq.s32.totalorder %v729, 1
      %vm762 = vcmp.eq.s32.totalorder %v730, 1
      %vm763 = vcmp.eq.s32.totalorder %v731, 1
      %vm764 = vcmp.eq.s32.totalorder %v732, 1
      %vm765 = vcmp.eq.s32.totalorder %v733, 1
      %vm766 = vcmp.eq.s32.totalorder %v734, 1
      %vm767 = vcmp.eq.s32.totalorder %v735, 1
      %vm768 = vcmp.eq.s32.totalorder %v736, 1
      %vm769 = vcmp.eq.s32.totalorder %v737, 1
      %vm770 = vcmp.eq.s32.totalorder %v738, 1
      %vm771 = vcmp.eq.s32.totalorder %v739, 1
      %v772 = vsel %vm740, %v676, 0.0
      %v773 = vsel %vm741, %v677, 0.0
      %v774 = vsel %vm742, %v678, 0.0
      %v775 = vsel %vm743, %v679, 0.0
      %v776 = vsel %vm744, %v680, 0.0
      %v777 = vsel %vm745, %v681, 0.0
      %v778 = vsel %vm746, %v682, 0.0
      %v779 = vsel %vm747, %v683, 0.0
      %v780 = vsel %vm748, %v684, 0.0
      %v781 = vsel %vm749, %v685, 0.0
      %v782 = vsel %vm750, %v686, 0.0
      %v783 = vsel %vm751, %v687, 0.0
      %v784 = vsel %vm752, %v688, 0.0
      %v785 = vsel %vm753, %v689, 0.0
      %v786 = vsel %vm754, %v690, 0.0
      %v787 = vsel %vm755, %v691, 0.0
      %v788 = vsel %vm756, %v692, 0.0
      %v789 = vsel %vm757, %v693, 0.0
      %v790 = vsel %vm758, %v694, 0.0
      %v791 = vsel %vm759, %v695, 0.0
      %v792 = vsel %vm760, %v696, 0.0
      %v793 = vsel %vm761, %v697, 0.0
      %v794 = vsel %vm762, %v698, 0.0
      %v795 = vsel %vm763, %v699, 0.0
      %v796 = vsel %vm764, %v700, 0.0
      %v797 = vsel %vm765, %v701, 0.0
      %v798 = vsel %vm766, %v702, 0.0
      %v799 = vsel %vm767, %v703, 0.0
      %v800 = vsel %vm768, %v704, 0.0
      %v801 = vsel %vm769, %v705, 0.0
      %v802 = vsel %vm770, %v706, 0.0
      %v803 = vsel %vm771, %v707, 0.0
      %v804 = vsel %vm579, 1, 0
      %v805 = vsel %vm580, 1, 0
      %v806 = vcvt.s32.f32 %v804
      %v807 = vcvt.s32.f32 %v805
      %v808 = vld [vmem:[%s533] sm:$0x7]
      %809 = vmatprep.subr.mxu0 0.0
      %810 = vmatpush1.msra.mxu0 %v772
      %811 = vmatprep.subr.mxu0 0.0
      %812 = vmatpush1.msra.mxu0 %v773
      %813 = vmatprep.subr.mxu0 0.0
      %814 = vmatpush1.msra.mxu0 %v774
      %815 = vmatprep.subr.mxu0 0.0
      %816 = vmatpush1.msra.mxu0 %v775
      %817 = vmatprep.subr.mxu0 0.0
      %818 = vmatpush1.msra.mxu0 %v776
      %819 = vmatprep.subr.mxu0 0.0
      %820 = vmatpush1.msra.mxu0 %v777
      %821 = vmatprep.subr.mxu0 0.0
      %822 = vmatpush1.msra.mxu0 %v778
      %823 = vmatprep.subr.mxu0 0.0
      %824 = vmatpush1.msra.mxu0 %v779
      %825 = vmatprep.subr.mxu0 0.0
      %826 = vmatpush1.msra.mxu0 %v780
      %827 = vmatprep.subr.mxu0 0.0
      %828 = vmatpush1.msra.mxu0 %v781
      %829 = vmatprep.subr.mxu0 0.0
      %830 = vmatpush1.msra.mxu0 %v782
      %831 = vmatprep.subr.mxu0 0.0
      %832 = vmatpush1.msra.mxu0 %v783
      %833 = vmatprep.subr.mxu0 0.0
      %834 = vmatpush1.msra.mxu0 %v784
      %835 = vmatprep.subr.mxu0 0.0
      %836 = vmatpush1.msra.mxu0 %v785
      %837 = vmatprep.subr.mxu0 0.0
      %838 = vmatpush1.msra.mxu0 %v786
      %839 = vmatprep.subr.mxu0 0.0
      %840 = vmatpush1.msra.mxu0 %v787
      %841 = vmatprep.subr.mxu0 0.0
      %842 = vmatpush1.msra.mxu0 %v788
      %843 = vmatprep.subr.mxu0 0.0
      %844 = vmatpush1.msra.mxu0 %v789
      %845 = vmatprep.subr.mxu0 0.0
      %846 = vmatpush1.msra.mxu0 %v790
      %847 = vmatprep.subr.mxu0 0.0
      %848 = vmatpush1.msra.mxu0 %v791
      %849 = vmatprep.subr.mxu0 0.0
      %850 = vmatpush1.msra.mxu0 %v792
      %851 = vmatprep.subr.mxu0 0.0
      %852 = vmatpush1.msra.mxu0 %v793
      %853 = vmatprep.subr.mxu0 0.0
      %854 = vmatpush1.msra.mxu0 %v794
      %855 = vmatprep.subr.mxu0 0.0
      %856 = vmatpush1.msra.mxu0 %v795
      %857 = vmatprep.subr.mxu0 0.0
      %858 = vmatpush1.msra.mxu0 %v796
      %859 = vmatprep.subr.mxu0 0.0
      %860 = vmatpush1.msra.mxu0 %v797
      %861 = vmatprep.subr.mxu0 0.0
      %862 = vmatpush1.msra.mxu0 %v798
      %863 = vmatprep.subr.mxu0 0.0
      %864 = vmatpush1.msra.mxu0 %v799
      %865 = vmatprep.subr.mxu0 0.0
      %866 = vmatpush1.msra.mxu0 %v800
      %867 = vmatprep.subr.mxu0 0.0
      %868 = vmatpush1.msra.mxu0 %v801
      %869 = vmatprep.subr.mxu0 0.0
      %870 = vmatpush1.msra.mxu0 %v802
      %871 = vmatprep.subr.mxu0 0.0
      %872 = vmatpush1.msra.mxu0 %v803
      %873 = vmatprep.mubr.f32.mxu0 %v807
      %874 = vmatmul.mubr.f32.gmra.mrb[0].mxu0 %v806
      %v875 = vpop.f32.mrb[0].mxu0
      %v876 = vadd.f32 0.0, %v875
      %v877 = vpop.f32.mrb[0].mxu0
      %878 = vdwg.mxu0
      %v879 = vadd.f32 %v808, %v876
      %vm880 = vcmask 26624
      %881 = vst.msk [vmem:[%s533] sm:$0x7] %vm880, %v879
      %v882 = vld [vmem:[%s541] sm:$0x7]
      %vm883 = vcmask 1042432
      %v884 = vsel %vm883, %v806, 0.0
      %v885 = vsel %vm883, %v807, 0.0
      %v886 = vadd.f32 %v884, %v885
      %887 = vadd.xlane.f32.xlu0 %v886
      %v888 = vpop.xlane.xlu0 %887
      %v889 = vadd.f32 %v882, %v888
      %vm890 = vcmask 2048
      %891 = vst.msk [vmem:[%s541] sm:$0x7] %vm890, %v889
      %vm892 = vcmp.lt.s32.totalorder %v562, 260
      %vm893 = vcmp.lt.s32.totalorder %v563, 260
      %v894 = vld [vmem:[%s521] sm:$0x3]
      %v895 = vlaneseq
      %v896 = vshrl.u32 %v895, 7
      %v897 = vsub.s32 0, %v896
      %v898 = vrot.slane %v894, %v897
      %v899 = vlaneseq
      %v900 = vshrl.u32 %v899, 7
      %v901 = vsub.s32 1, %v900
      %v902 = vrot.slane %v894, %v901
      %vm903 = vcmp.eq.s32.totalorder %v567, %v898
      %vm904 = vcmp.eq.s32.totalorder %v567, %v902
      %vm905 = vmand %vm903, %vm892
      %vm906 = vmand %vm904, %vm893
      %vm907 = vcmp.lt.s32.totalorder %v612, 260
      %vm908 = vcmp.lt.s32.totalorder %v613, 260
      %vm909 = vcmp.lt.s32.totalorder %v614, 260
      %vm910 = vcmp.lt.s32.totalorder %v615, 260
      %vm911 = vcmp.lt.s32.totalorder %v616, 260
      %vm912 = vcmp.lt.s32.totalorder %v617, 260
      %vm913 = vcmp.lt.s32.totalorder %v618, 260
      %vm914 = vcmp.lt.s32.totalorder %v619, 260
      %vm915 = vcmp.lt.s32.totalorder %v620, 260
      %vm916 = vcmp.lt.s32.totalorder %v621, 260
      %vm917 = vcmp.lt.s32.totalorder %v622, 260
      %vm918 = vcmp.lt.s32.totalorder %v623, 260
      %vm919 = vcmp.lt.s32.totalorder %v624, 260
      %vm920 = vcmp.lt.s32.totalorder %v625, 260
      %vm921 = vcmp.lt.s32.totalorder %v626, 260
      %vm922 = vcmp.lt.s32.totalorder %v627, 260
      %vm923 = vcmp.lt.s32.totalorder %v628, 260
      %vm924 = vcmp.lt.s32.totalorder %v629, 260
      %vm925 = vcmp.lt.s32.totalorder %v630, 260
      %vm926 = vcmp.lt.s32.totalorder %v631, 260
      %vm927 = vcmp.lt.s32.totalorder %v632, 260
      %vm928 = vcmp.lt.s32.totalorder %v633, 260
      %vm929 = vcmp.lt.s32.totalorder %v634, 260
      %vm930 = vcmp.lt.s32.totalorder %v635, 260
      %vm931 = vcmp.lt.s32.totalorder %v636, 260
      %vm932 = vcmp.lt.s32.totalorder %v637, 260
      %vm933 = vcmp.lt.s32.totalorder %v638, 260
      %vm934 = vcmp.lt.s32.totalorder %v639, 260
      %vm935 = vcmp.lt.s32.totalorder %v640, 260
      %vm936 = vcmp.lt.s32.totalorder %v641, 260
      %vm937 = vcmp.lt.s32.totalorder %v642, 260
      %vm938 = vcmp.lt.s32.totalorder %v643, 260
      %v939 = vld [vmem:[%s483] sm:$0xff]
      %v940 = vld [vmem:[%s483 + $0x8] sm:$0xff]
      %v941 = vld [vmem:[%s483 + $0x10] sm:$0xff]
      %v942 = vld [vmem:[%s483 + $0x18] sm:$0xff]
      %v943 = vld [vmem:[%s483 + $0x20] sm:$0xff]
      %v944 = vld [vmem:[%s483 + $0x28] sm:$0xff]
      %v945 = vld [vmem:[%s483 + $0x30] sm:$0xff]
      %v946 = vld [vmem:[%s483 + $0x38] sm:$0xff]
      %v947 = vld [vmem:[%s483 + $0x40] sm:$0xff]
      %v948 = vld [vmem:[%s483 + $0x48] sm:$0xff]
      %v949 = vld [vmem:[%s483 + $0x50] sm:$0xff]
      %v950 = vld [vmem:[%s483 + $0x58] sm:$0xff]
      %v951 = vld [vmem:[%s483 + $0x60] sm:$0xff]
      %v952 = vld [vmem:[%s483 + $0x68] sm:$0xff]
      %v953 = vld [vmem:[%s483 + $0x70] sm:$0xff]
      %v954 = vld [vmem:[%s483 + $0x78] sm:$0xff]
      %v955 = vld [vmem:[%s483 + $0x80] sm:$0xff]
      %v956 = vld [vmem:[%s483 + $0x88] sm:$0xff]
      %v957 = vld [vmem:[%s483 + $0x90] sm:$0xff]
      %v958 = vld [vmem:[%s483 + $0x98] sm:$0xff]
      %v959 = vld [vmem:[%s483 + $0xa0] sm:$0xff]
      %v960 = vld [vmem:[%s483 + $0xa8] sm:$0xff]
      %v961 = vld [vmem:[%s483 + $0xb0] sm:$0xff]
      %v962 = vld [vmem:[%s483 + $0xb8] sm:$0xff]
      %v963 = vld [vmem:[%s483 + $0xc0] sm:$0xff]
      %v964 = vld [vmem:[%s483 + $0xc8] sm:$0xff]
      %v965 = vld [vmem:[%s483 + $0xd0] sm:$0xff]
      %v966 = vld [vmem:[%s483 + $0xd8] sm:$0xff]
      %v967 = vld [vmem:[%s483 + $0xe0] sm:$0xff]
      %v968 = vld [vmem:[%s483 + $0xe8] sm:$0xff]
      %v969 = vld [vmem:[%s483 + $0xf0] sm:$0xff]
      %v970 = vld [vmem:[%s483 + $0xf8] sm:$0xff]
      %v971 = vsel %vm907, 1, 0
      %v972 = vsel %vm908, 1, 0
      %v973 = vsel %vm909, 1, 0
      %v974 = vsel %vm910, 1, 0
      %v975 = vsel %vm911, 1, 0
      %v976 = vsel %vm912, 1, 0
      %v977 = vsel %vm913, 1, 0
      %v978 = vsel %vm914, 1, 0
      %v979 = vsel %vm915, 1, 0
      %v980 = vsel %vm916, 1, 0
      %v981 = vsel %vm917, 1, 0
      %v982 = vsel %vm918, 1, 0
      %v983 = vsel %vm919, 1, 0
      %v984 = vsel %vm920, 1, 0
      %v985 = vsel %vm921, 1, 0
      %v986 = vsel %vm922, 1, 0
      %v987 = vsel %vm923, 1, 0
      %v988 = vsel %vm924, 1, 0
      %v989 = vsel %vm925, 1, 0
      %v990 = vsel %vm926, 1, 0
      %v991 = vsel %vm927, 1, 0
      %v992 = vsel %vm928, 1, 0
      %v993 = vsel %vm929, 1, 0
      %v994 = vsel %vm930, 1, 0
      %v995 = vsel %vm931, 1, 0
      %v996 = vsel %vm932, 1, 0
      %v997 = vsel %vm933, 1, 0
      %v998 = vsel %vm934, 1, 0
      %v999 = vsel %vm935, 1, 0
      %v1000 = vsel %vm936, 1, 0
      %v1001 = vsel %vm937, 1, 0
      %v1002 = vsel %vm938, 1, 0
      %vm1003 = vcmp.eq.s32.totalorder %v971, 1
      %vm1004 = vcmp.eq.s32.totalorder %v972, 1
      %vm1005 = vcmp.eq.s32.totalorder %v973, 1
      %vm1006 = vcmp.eq.s32.totalorder %v974, 1
      %vm1007 = vcmp.eq.s32.totalorder %v975, 1
      %vm1008 = vcmp.eq.s32.totalorder %v976, 1
      %vm1009 = vcmp.eq.s32.totalorder %v977, 1
      %vm1010 = vcmp.eq.s32.totalorder %v978, 1
      %vm1011 = vcmp.eq.s32.totalorder %v979, 1
      %vm1012 = vcmp.eq.s32.totalorder %v980, 1
      %vm1013 = vcmp.eq.s32.totalorder %v981, 1
      %vm1014 = vcmp.eq.s32.totalorder %v982, 1
      %vm1015 = vcmp.eq.s32.totalorder %v983, 1
      %vm1016 = vcmp.eq.s32.totalorder %v984, 1
      %vm1017 = vcmp.eq.s32.totalorder %v985, 1
      %vm1018 = vcmp.eq.s32.totalorder %v986, 1
      %vm1019 = vcmp.eq.s32.totalorder %v987, 1
      %vm1020 = vcmp.eq.s32.totalorder %v988, 1
      %vm1021 = vcmp.eq.s32.totalorder %v989, 1
      %vm1022 = vcmp.eq.s32.totalorder %v990, 1
      %vm1023 = vcmp.eq.s32.totalorder %v991, 1
      %vm1024 = vcmp.eq.s32.totalorder %v992, 1
      %vm1025 = vcmp.eq.s32.totalorder %v993, 1
      %vm1026 = vcmp.eq.s32.totalorder %v994, 1
      %vm1027 = vcmp.eq.s32.totalorder %v995, 1
      %vm1028 = vcmp.eq.s32.totalorder %v996, 1
      %vm1029 = vcmp.eq.s32.totalorder %v997, 1
      %vm1030 = vcmp.eq.s32.totalorder %v998, 1
      %vm1031 = vcmp.eq.s32.totalorder %v999, 1
      %vm1032 = vcmp.eq.s32.totalorder %v1000, 1
      %vm1033 = vcmp.eq.s32.totalorder %v1001, 1
      %vm1034 = vcmp.eq.s32.totalorder %v1002, 1
      %v1035 = vsel %vm1003, %v939, 0.0
      %v1036 = vsel %vm1004, %v940, 0.0
      %v1037 = vsel %vm1005, %v941, 0.0
      %v1038 = vsel %vm1006, %v942, 0.0
      %v1039 = vsel %vm1007, %v943, 0.0
      %v1040 = vsel %vm1008, %v944, 0.0
      %v1041 = vsel %vm1009, %v945, 0.0
      %v1042 = vsel %vm1010, %v946, 0.0
      %v1043 = vsel %vm1011, %v947, 0.0
      %v1044 = vsel %vm1012, %v948, 0.0
      %v1045 = vsel %vm1013, %v949, 0.0
      %v1046 = vsel %vm1014, %v950, 0.0
      %v1047 = vsel %vm1015, %v951, 0.0
      %v1048 = vsel %vm1016, %v952, 0.0
      %v1049 = vsel %vm1017, %v953, 0.0
      %v1050 = vsel %vm1018, %v954, 0.0
      %v1051 = vsel %vm1019, %v955, 0.0
      %v1052 = vsel %vm1020, %v956, 0.0
      %v1053 = vsel %vm1021, %v957, 0.0
      %v1054 = vsel %vm1022, %v958, 0.0
      %v1055 = vsel %vm1023, %v959, 0.0
      %v1056 = vsel %vm1024, %v960, 0.0
      %v1057 = vsel %vm1025, %v961, 0.0
      %v1058 = vsel %vm1026, %v962, 0.0
      %v1059 = vsel %vm1027, %v963, 0.0
      %v1060 = vsel %vm1028, %v964, 0.0
      %v1061 = vsel %vm1029, %v965, 0.0
      %v1062 = vsel %vm1030, %v966, 0.0
      %v1063 = vsel %vm1031, %v967, 0.0
      %v1064 = vsel %vm1032, %v968, 0.0
      %v1065 = vsel %vm1033, %v969, 0.0
      %v1066 = vsel %vm1034, %v970, 0.0
      %v1067 = vsel %vm905, 1, 0
      %v1068 = vsel %vm906, 1, 0
      %v1069 = vcvt.s32.f32 %v1067
      %v1070 = vcvt.s32.f32 %v1068
      %v1071 = vld [vmem:[%s537] sm:$0x7]
      %1072 = vmatprep.subr.mxu0 0.0
      %1073 = vmatpush1.msra.mxu0 %v1035
      %1074 = vmatprep.subr.mxu0 0.0
      %1075 = vmatpush1.msra.mxu0 %v1036
      %1076 = vmatprep.subr.mxu0 0.0
      %1077 = vmatpush1.msra.mxu0 %v1037
      %1078 = vmatprep.subr.mxu0 0.0
      %1079 = vmatpush1.msra.mxu0 %v1038
      %1080 = vmatprep.subr.mxu0 0.0
      %1081 = vmatpush1.msra.mxu0 %v1039
      %1082 = vmatprep.subr.mxu0 0.0
      %1083 = vmatpush1.msra.mxu0 %v1040
      %1084 = vmatprep.subr.mxu0 0.0
      %1085 = vmatpush1.msra.mxu0 %v1041
      %1086 = vmatprep.subr.mxu0 0.0
      %1087 = vmatpush1.msra.mxu0 %v1042
      %1088 = vmatprep.subr.mxu0 0.0
      %1089 = vmatpush1.msra.mxu0 %v1043
      %1090 = vmatprep.subr.mxu0 0.0
      %1091 = vmatpush1.msra.mxu0 %v1044
      %1092 = vmatprep.subr.mxu0 0.0
      %1093 = vmatpush1.msra.mxu0 %v1045
      %1094 = vmatprep.subr.mxu0 0.0
      %1095 = vmatpush1.msra.mxu0 %v1046
      %1096 = vmatprep.subr.mxu0 0.0
      %1097 = vmatpush1.msra.mxu0 %v1047
      %1098 = vmatprep.subr.mxu0 0.0
      %1099 = vmatpush1.msra.mxu0 %v1048
      %1100 = vmatprep.subr.mxu0 0.0
      %1101 = vmatpush1.msra.mxu0 %v1049
      %1102 = vmatprep.subr.mxu0 0.0
      %1103 = vmatpush1.msra.mxu0 %v1050
      %1104 = vmatprep.subr.mxu0 0.0
      %1105 = vmatpush1.msra.mxu0 %v1051
      %1106 = vmatprep.subr.mxu0 0.0
      %1107 = vmatpush1.msra.mxu0 %v1052
      %1108 = vmatprep.subr.mxu0 0.0
      %1109 = vmatpush1.msra.mxu0 %v1053
      %1110 = vmatprep.subr.mxu0 0.0
      %1111 = vmatpush1.msra.mxu0 %v1054
      %1112 = vmatprep.subr.mxu0 0.0
      %1113 = vmatpush1.msra.mxu0 %v1055
      %1114 = vmatprep.subr.mxu0 0.0
      %1115 = vmatpush1.msra.mxu0 %v1056
      %1116 = vmatprep.subr.mxu0 0.0
      %1117 = vmatpush1.msra.mxu0 %v1057
      %1118 = vmatprep.subr.mxu0 0.0
      %1119 = vmatpush1.msra.mxu0 %v1058
      %1120 = vmatprep.subr.mxu0 0.0
      %1121 = vmatpush1.msra.mxu0 %v1059
      %1122 = vmatprep.subr.mxu0 0.0
      %1123 = vmatpush1.msra.mxu0 %v1060
      %1124 = vmatprep.subr.mxu0 0.0
      %1125 = vmatpush1.msra.mxu0 %v1061
      %1126 = vmatprep.subr.mxu0 0.0
      %1127 = vmatpush1.msra.mxu0 %v1062
      %1128 = vmatprep.subr.mxu0 0.0
      %1129 = vmatpush1.msra.mxu0 %v1063
      %1130 = vmatprep.subr.mxu0 0.0
      %1131 = vmatpush1.msra.mxu0 %v1064
      %1132 = vmatprep.subr.mxu0 0.0
      %1133 = vmatpush1.msra.mxu0 %v1065
      %1134 = vmatprep.subr.mxu0 0.0
      %1135 = vmatpush1.msra.mxu0 %v1066
      %1136 = vmatprep.mubr.f32.mxu0 %v1070
      %1137 = vmatmul.mubr.f32.gmra.mrb[0].mxu0 %v1069
      %v1138 = vpop.f32.mrb[0].mxu0
      %v1139 = vadd.f32 0.0, %v1138
      %v1140 = vpop.f32.mrb[0].mxu0
      %1141 = vdwg.mxu0
      %v1142 = vadd.f32 %v1071, %v1139
      %1143 = vst.msk [vmem:[%s537] sm:$0x7] %vm880, %v1142
      %v1144 = vld [vmem:[%s545] sm:$0x7]
      %v1145 = vsel %vm883, %v1069, 0.0
      %v1146 = vsel %vm883, %v1070, 0.0
      %v1147 = vadd.f32 %v1145, %v1146
      %1148 = vadd.xlane.f32.xlu0 %v1147
      %v1149 = vpop.xlane.xlu0 %1148
      %v1150 = vadd.f32 %v1144, %v1149
      %1151 = vst.msk [vmem:[%s545] sm:$0x7] %vm890, %v1150
      %p1152 = scmp.lt.s32.totalorder %s23, 1
      %s1153 = scalar_select %p1152, %s23, 1
      %s1154 = smul.addr %s1153, 4
      %s1155 = scalar_lea.vmem %s4, %s1154
      %p1156 = scmp.lt.s32.totalorder %s23, 1
      %s1157 = scalar_select %p1156, %s23, 1
      %s1158 = smul.addr %s1157, 4
      %s1159 = scalar_lea.vmem %s5, %s1158
      %p1160 = scmp.lt.s32.totalorder %s23, 1
      %s1161 = scalar_select %p1160, %s23, 1
      %s1162 = smul.addr %s1161, 4
      %s1163 = scalar_lea.vmem %s6, %s1162
      %p1164 = scmp.lt.s32.totalorder %s23, 1
      %s1165 = scalar_select %p1164, %s23, 1
      %s1166 = smul.addr %s1165, 4
      %s1167 = scalar_lea.vmem %s7, %s1166
      // Predicated region
      $region41: #{tpu_custom_call.1} parent=35 // pred_check
        %p1168 = pneg %p177
      $region42: #{tpu_custom_call.1} parent=35 // pred_check_branch
        %1170 = sbr.rel (%p1168) target = $region44
      $region43: #{tpu_custom_call.1} parent=35 // pred_region
        _
      $region44: #{tpu_custom_call.1} parent=35 // pred_fallthru
        _
      // Predicated region
      $region45: #{tpu_custom_call.1} parent=35 // pred_check
        %p1171 = pneg %p203
      $region46: #{tpu_custom_call.1} parent=35 // pred_check_branch
        %1173 = sbr.rel (%p1171) target = $region48
      $region47: #{tpu_custom_call.1} parent=35 // pred_region
        _
      $region48: #{tpu_custom_call.1} parent=35 // pred_fallthru
        _
      // Predicated region
      $region49: #{tpu_custom_call.1} parent=35 // pred_check
        %p1174 = pneg %p229
      $region50: #{tpu_custom_call.1} parent=35 // pred_check_branch
        %1176 = sbr.rel (%p1174) target = $region52
      $region51: #{tpu_custom_call.1} parent=35 // pred_region
        _
      $region52: #{tpu_custom_call.1} parent=35 // pred_fallthru
        _
      // Predicated region
      $region53: #{tpu_custom_call.1} parent=35 // pred_check
        %p1177 = pneg %p255
      $region54: #{tpu_custom_call.1} parent=35 // pred_check_branch
        %1179 = sbr.rel (%p1177) target = $region56
      $region55: #{tpu_custom_call.1} parent=35 // pred_region
        _
      $region56: #{tpu_custom_call.1} parent=35 // pred_fallthru
        _
    $region36: #{tpu_custom_call.1} parent=5 // pred_fallthru
      _
    %p1180 = scmp.le.s32.totalorder 2, %s14
    // Predicated region
    $region57: #{tpu_custom_call.1} parent=5 // pred_check
      %p1181 = pneg %p1180
    $region58: #{tpu_custom_call.1} parent=5 // pred_check_branch
      %1183 = sbr.rel (%p1181) target = $region60
    $region59: #{tpu_custom_call.1} parent=5 // pred_region
      %s1184 = ssub.s32 %s14, 2
      // Predicated region
      $region61: #{tpu_custom_call.1} parent=59 // pred_check
        %p1185 = pneg %p183
      $region62: #{tpu_custom_call.1} parent=59 // pred_check_branch
        %1187 = sbr.rel (%p1185) target = $region64
      $region63: #{tpu_custom_call.1} parent=59 // pred_region
        %p1188 = scmp.lt.s32.totalorder %s25, 1
        %s1189 = scalar_select %p1188, %s25, 1
        %s1190 = smul.addr %s1189, 4
        %s1191 = scalar_lea.vmem %s4, %s1190
      $region64: #{tpu_custom_call.1} parent=59 // pred_fallthru
        _
      // Predicated region
      $region65: #{tpu_custom_call.1} parent=59 // pred_check
        %p1192 = pneg %p209
      $region66: #{tpu_custom_call.1} parent=59 // pred_check_branch
        %1194 = sbr.rel (%p1192) target = $region68
      $region67: #{tpu_custom_call.1} parent=59 // pred_region
        %p1195 = scmp.lt.s32.totalorder %s25, 1
        %s1196 = scalar_select %p1195, %s25, 1
        %s1197 = smul.addr %s1196, 4
        %s1198 = scalar_lea.vmem %s5, %s1197
      $region68: #{tpu_custom_call.1} parent=59 // pred_fallthru
        _
      // Predicated region
      $region69: #{tpu_custom_call.1} parent=59 // pred_check
        %p1199 = pneg %p235
      $region70: #{tpu_custom_call.1} parent=59 // pred_check_branch
        %1201 = sbr.rel (%p1199) target = $region72
      $region71: #{tpu_custom_call.1} parent=59 // pred_region
        %p1202 = scmp.lt.s32.totalorder %s25, 1
        %s1203 = scalar_select %p1202, %s25, 1
        %s1204 = smul.addr %s1203, 4
        %s1205 = scalar_lea.vmem %s6, %s1204
      $region72: #{tpu_custom_call.1} parent=59 // pred_fallthru
        _
      // Predicated region
      $region73: #{tpu_custom_call.1} parent=59 // pred_check
        %p1206 = pneg %p261
      $region74: #{tpu_custom_call.1} parent=59 // pred_check_branch
        %1208 = sbr.rel (%p1206) target = $region76
      $region75: #{tpu_custom_call.1} parent=59 // pred_region
        %p1209 = scmp.lt.s32.totalorder %s25, 1
        %s1210 = scalar_select %p1209, %s25, 1
        %s1211 = smul.addr %s1210, 4
        %s1212 = scalar_lea.vmem %s7, %s1211
      $region76: #{tpu_custom_call.1} parent=59 // pred_fallthru
        _
    $region60: #{tpu_custom_call.1} parent=5 // pred_fallthru
      _
  $region6: #{tpu_custom_call.1} parent=0 // loop_footer
    %s18 = sadd.s32 1, %s14
  $region7: #{tpu_custom_call.1} parent=0 // loop_footer_branch
    %13 = sbr.rel target = $region3
  $region8: #{tpu_custom_call.1} parent=0 // loop_exit
    _

</llo_original>
